<compile_context>
chip_gen: v5e
topology: v5e:2x2
jax: 0.10.0
libtpu: 0.0.40
codegen_flags: <defaults>
</compile_context>

<pallas_src>
import functools

import jax
import jax.numpy as jnp
from jax import lax
from jax.experimental import pallas as pl
from jax.experimental.pallas import tpu as pltpu

_LN2 = 0.6931471805599453


def _pick_row_tile(batch, want):
    """Largest row tile <= want that divides batch and is sublane-friendly."""
    want = max(1, min(int(want), batch))
    for tm in range(want, 0, -1):
        if batch % tm == 0 and (tm % 8 == 0 or tm == batch):
            return tm
    return batch


def _triplet_sndcg_kernel(v_ref, t_ref, vtext_ref, ttext_ref,     # inputs
                          out_ref,                                 # (1, 1, 8) partial sums
                          xs_ref, ys_ref, gain_ref,                # (B, TM) VMEM scratch
                          *, margin, tau, B, TM, n_cap, unroll):
    f32 = jnp.float32
    blk_start = pl.multiple_of(pl.program_id(0) * TM, TM)
    cdims = (((1,), (1,)), ((), ()))          # contract last dims: A @ B^T

    v_all = v_ref[...]                        # (B, D)   resident across the grid
    t_all = t_ref[...]                        # (B, D)
    v_blk = v_ref[pl.ds(blk_start, TM), :]    # (TM, D)  rows of this block
    t_blk = t_ref[pl.ds(blk_start, TM), :]    # (TM, D)

    # Transposed score slabs for this row block.
    #   X[j, i] = <v_{blk+i}, t_j> = scores[blk+i, j]
    #   Y[j, i] = <t_{blk+i}, v_j> = scores[j, blk+i]
    X = lax.dot_general(t_all, v_blk, cdims, preferred_element_type=f32)   # (B, TM)
    Y = lax.dot_general(v_all, t_blk, cdims, preferred_element_type=f32)   # (B, TM)

    # Diagonal / masks in transposed orientation.
    j_ids = lax.broadcasted_iota(jnp.int32, (B, TM), 0)
    i_ids = lax.broadcasted_iota(jnp.int32, (B, TM), 1) + blk_start
    is_diag = j_ids == i_ids

    # scores[g, g] for the block rows: one masked sublane reduce on X (shared by
    # both hinge directions; O(B*TM) per block, negligible vs the O(B^3) loop).
    diag = jnp.sum(jnp.where(is_diag, X, 0.0), axis=0, keepdims=True)       # (1, TM)

    # ---- pairwise hinge (per block row, both directions) --------------------
    lt_max = jnp.max(jnp.where(is_diag, 0.0, jnp.maximum(X - diag + margin, 0.0)),
                     axis=0, keepdims=True)
    lv_max = jnp.max(jnp.where(is_diag, 0.0, jnp.maximum(Y - diag + margin, 0.0)),
                     axis=0, keepdims=True)

    # ---- relevance (transposed): relT[j, i] = relevance[blk+i, j] ------------
    tt = ttext_ref[...]
    tt = tt * lax.rsqrt(jnp.sum(tt * tt, axis=1, keepdims=True))            # normalize once
    rel_raw = None
    for c in range(n_cap):                                                  # n_cap tiny matmuls
        vt_c = vtext_ref[c]                                                 # (TM, Dt)
        vt_c = vt_c * lax.rsqrt(jnp.sum(vt_c * vt_c, axis=1, keepdims=True))
        r = lax.dot_general(tt, vt_c, cdims, preferred_element_type=f32)    # (B, TM)
        rel_raw = r if rel_raw is None else jnp.maximum(rel_raw, r)
    relT = jnp.where(is_diag, 1.0, (1.0 + rel_raw) * 0.5)

    # gain = 2^rel - 1 computed once per block; gain is strictly monotone in rel,
    # so the relevance real-rank indicator can compare gains directly in the loop.
    gainT = jnp.exp(relT * _LN2) - 1.0                                      # (B, TM)

    # ---- stash slabs in VMEM scratch for dynamic row extraction --------------
    half_inv_tau = 0.5 / tau
    Xs = X * half_inv_tau        # pre-scale once: tanh(Xs_k - Xs_j) == tanh(diff/(2*tau))
    Ys = Y * half_inv_tau        # (sign preserved, so real ranks also use Xs/Ys)
    xs_ref[...] = Xs
    ys_ref[...] = Ys
    gain_ref[...] = gainT

    # soft rank: sum_{k!=j} sigmoid(diff/tau) + 1
    #          = sum_k (0.5 + 0.5*tanh(diff/(2tau))) - 0.5 + 1
    # => 1 + rank = 0.5*sum_k tanh(...) + (0.5*B + 1.5)
    soft_bias = 0.5 * B + 1.5

    def body(j, carry):
        idcg, dt, rdt, dv, rdv = carry
        xj = xs_ref[pl.ds(j, 1), :]          # (1, TM)  dynamic sublane row reads
        yj = ys_ref[pl.ds(j, 1), :]
        gj = gain_ref[pl.ds(j, 1), :]

        dX = Xs - xj                         # (scores[g,k] - scores[g,j]) / (2*tau)
        dY = Ys - yj
        dG = gainT - gj                      # sign(gain diff) == sign(rel diff)

        tsum_t = jnp.sum(jnp.tanh(dX), axis=0, keepdims=True)
        tsum_v = jnp.sum(jnp.tanh(dY), axis=0, keepdims=True)
        cnt_t = jnp.sum((dX > 0.0).astype(f32), axis=0, keepdims=True)
        cnt_v = jnp.sum((dY > 0.0).astype(f32), axis=0, keepdims=True)
        cnt_r = jnp.sum((dG > 0.0).astype(f32), axis=0, keepdims=True)

        # Natural logs: the log2 constants cancel in every returned dcg/idcg ratio.
        return (idcg + gj / jnp.log(cnt_r + 2.0),
                dt + gj / jnp.log(0.5 * tsum_t + soft_bias),
                rdt + gj / jnp.log(cnt_t + 2.0),
                dv + gj / jnp.log(0.5 * tsum_v + soft_bias),
                rdv + gj / jnp.log(cnt_v + 2.0))

    zero = jnp.zeros((1, TM), f32)
    idcg, dt, rdt, dv, rdv = lax.fori_loop(
        0, B, body, (zero, zero, zero, zero, zero), unroll=unroll)

    inv_idcg = 1.0 / idcg
    parts = (lt_max, lv_max,
             dt * inv_idcg, rdt * inv_idcg,
             dv * inv_idcg, rdv * inv_idcg)

    # Pack 6 per-block partial sums into one 8-lane tile (lanes 6,7 are zero).
    lane = lax.broadcasted_iota(jnp.int32, (1, 8), 1)
    packed = jnp.zeros((1, 8), f32)
    for idx, p in enumerate(parts):
        packed = packed + jnp.where(lane == idx, jnp.sum(p, axis=1, keepdims=True), 0.0)
    out_ref[...] = packed.reshape(1, 1, 8)


def triplet_sndcg_loss(v, t, v_text_emb, t_text_emb,
                       margin=0.2, tau=0.1, sndcg_weight=0.5, row_tile=256):
    """Forward pass of TripletSNDCGLoss. row_tile: 256 for v5e/v6e, 128 on v7x."""
    B, D = v.shape
    n_cap, Dt = v_text_emb.shape[1], v_text_emb.shape[2]
    v_text = jnp.transpose(v_text_emb, (1, 0, 2))    # torch's .transpose(0, 1): (n_cap, B, Dt)

    TM = _pick_row_tile(B, row_tile)
    num_blocks = B // TM

    kernel = functools.partial(_triplet_sndcg_kernel, margin=float(margin),
                               tau=float(tau), B=B, TM=TM, n_cap=n_cap,
                               unroll=min(8, B))

    grid_spec = pltpu.PrefetchScalarGridSpec(
        num_scalar_prefetch=0,
        grid=(num_blocks,),
        in_specs=[
            pl.BlockSpec((B, D), lambda i: (0, 0)),              # v   (resident)
            pl.BlockSpec((B, D), lambda i: (0, 0)),              # t   (resident)
            pl.BlockSpec((n_cap, TM, Dt), lambda i: (0, i, 0)),  # caption rows of block
            pl.BlockSpec((B, Dt), lambda i: (0, 0)),             # t_text (resident)
        ],
        out_specs=pl.BlockSpec((1, 1, 8), lambda i: (i, 0, 0)),
        scratch_shapes=[
            pltpu.VMEM((B, TM), jnp.float32),   # Xs  (pre-scaled scores, transposed)
            pltpu.VMEM((B, TM), jnp.float32),   # Ys
            pltpu.VMEM((B, TM), jnp.float32),   # gain = 2^rel - 1
        ],
    )

    # Advisory cost hint for the XLA scheduler (loop is O(B^3), tanh dominates EUP).
    cost = pl.CostEstimate(
        flops=int(4 * B * B * D + 2 * n_cap * B * B * Dt + 12 * B * B * B),
        transcendentals=int(2 * B * B * B + 6 * B * B),
        bytes_accessed=int(4 * (num_blocks * (2 * B * D + B * Dt)
                                + B * n_cap * Dt + num_blocks * 8)),
    )

    partials = pl.pallas_call(
        kernel,
        out_shape=jax.ShapeDtypeStruct((num_blocks, 1, 8), jnp.float32),
        grid_spec=grid_spec,
        compiler_params=pltpu.CompilerParams(
            dimension_semantics=("parallel",),          # megacore-shard row blocks (v7x)
            vmem_limit_bytes=64 * 1024 * 1024),
        cost_estimate=cost,
    )(v, t, v_text, t_text_emb)

    # Tiny cross-block combine (O(num_blocks * 8) work) in the wrapper.
    sums = jnp.sum(partials, axis=(0, 1))               # (8,)
    inv_b = 1.0 / B
    pairwise = 0.5 * (sums[0] + sums[1]) * inv_b
    ndcg_t = sums[2] * inv_b
    real_ndcg_t = sums[3] * inv_b
    ndcg_v = sums[4] * inv_b
    real_ndcg_v = sums[5] * inv_b
    listwise = 0.5 * ((1.0 - ndcg_t) + (1.0 - ndcg_v))
    w = sndcg_weight
    loss = (1.0 - w) * pairwise + w * listwise
    return loss, pairwise, listwise, ndcg_t, real_ndcg_t, ndcg_v, real_ndcg_v


def _reference(v, t, v_text_emb, t_text_emb, margin=0.2, tau=0.1, w=0.5):
    """Pure-JAX reference mirroring the PyTorch forward (for correctness check)."""
    B = v.shape[0]
    scores = v @ t.T
    eye = jnp.eye(B, dtype=jnp.float32)
    neg = 1.0 - eye
    vt = jnp.transpose(v_text_emb, (1, 0, 2))
    vt = vt / jnp.sqrt(jnp.sum(vt ** 2, axis=2, keepdims=True))
    tt = t_text_emb / jnp.sqrt(jnp.sum(t_text_emb ** 2, axis=1, keepdims=True))
    rel = jnp.einsum('cbd,ed->cbe', vt, tt).max(0)
    rel = (1.0 + rel) / 2.0
    rel = rel * neg + eye
    diag = jnp.diag(scores)
    lt = jnp.maximum(scores - diag[:, None] + margin, 0.0) * neg
    lv = jnp.maximum(scores - diag[None, :] + margin, 0.0) * neg
    pairwise = (lt.max(1).mean() + lv.max(0).mean()) / 2.0

    def sig(x):
        return 1.0 / (1.0 + jnp.exp(jnp.clip(-x / tau, -50.0, 50.0)))

    def diffs(s):
        return s[:, None, :] - s[:, :, None]   # [i,j,k] = s[i,k]-s[i,j]

    def softrank(s):
        return (sig(diffs(s)) * neg[None, :, :]).sum(-1) + 1.0

    def realrank(s):
        return (diffs(s) > 0).astype(jnp.float32).sum(-1) + 1.0

    gain = 2.0 ** rel - 1.0
    idcg = (gain / jnp.log2(1.0 + realrank(rel))).sum(-1)
    dcg_t = (gain / jnp.log2(1.0 + softrank(scores))).sum(-1)
    rdcg_t = (gain / jnp.log2(1.0 + realrank(scores))).sum(-1)
    sT = scores.T
    dcg_v = (gain / jnp.log2(1.0 + softrank(sT))).sum(-1)
    rdcg_v = (gain / jnp.log2(1.0 + realrank(sT))).sum(-1)
    ndcg_t = dcg_t / idcg
    ndcg_v = dcg_v / idcg
    listwise = ((1.0 - ndcg_t).mean() + (1.0 - ndcg_v).mean()) / 2.0
    loss = (1.0 - w) * pairwise + w * listwise
    return (loss, pairwise, listwise, ndcg_t.mean(), (rdcg_t / idcg).mean(),
            ndcg_v.mean(), (rdcg_v / idcg).mean())


if __name__ == "__main__":
    B, D, Dt, NCAP = 8, 32, 16, 5
    margin, tau, sndcg_weight = 0.2, 0.1, 0.5

    key = jax.random.PRNGKey(0)
    k1, k2, k3, k4 = jax.random.split(key, 4)
    v = jax.random.normal(k1, (B, D), dtype=jnp.float32)
    t = jax.random.normal(k2, (B, D), dtype=jnp.float32)
    # normalize v / t like typical retrieval embeddings (cosine_sim == plain mm in the module)
    v = v / jnp.linalg.norm(v, axis=1, keepdims=True)
    t = t / jnp.linalg.norm(t, axis=1, keepdims=True)
    v_text_emb = jax.random.normal(k3, (B, NCAP, Dt), dtype=jnp.float32)
    t_text_emb = jax.random.normal(k4, (B, Dt), dtype=jnp.float32)

    outs = triplet_sndcg_loss(v, t, v_text_emb, t_text_emb,
                              margin=margin, tau=tau, sndcg_weight=sndcg_weight)
    outs = jax.block_until_ready(outs)

    refs = _reference(v, t, v_text_emb, t_text_emb, margin=margin, tau=tau, w=sndcg_weight)
    refs = jax.block_until_ready(refs)

    names = ("loss", "pairwise", "listwise", "ndcg_t", "real_ndcg_t", "ndcg_v", "real_ndcg_v")
    for name, o, r in zip(names, outs, refs):
        assert abs(float(o) - float(r)) < 1e-4 + 1e-4 * abs(float(r)), (name, float(o), float(r))

    print("KERNEL_OK")
</pallas_src>

<mosaic_0001>
module attributes {stable_mosaic.version = 11 : i64} {
  func.func @_triplet_sndcg_kernel(%arg0: i32, %arg1: memref<8x32xf32, #tpu.memory_space<vmem>>, %arg2: memref<8x32xf32, #tpu.memory_space<vmem>>, %arg3: memref<5x8x16xf32, #tpu.memory_space<vmem>>, %arg4: memref<8x16xf32, #tpu.memory_space<vmem>>, %arg5: memref<1x1x8xf32, #tpu.memory_space<vmem>>, %arg6: memref<8x8xf32, #tpu.memory_space<vmem>>, %arg7: memref<8x8xf32, #tpu.memory_space<vmem>>, %arg8: memref<8x8xf32, #tpu.memory_space<vmem>>) attributes {dimension_semantics = [#tpu.dimension_semantics<parallel>], iteration_bounds = array<i64: 1>, scalar_prefetch = 0 : i64, scratch_operands = 3 : i64, tpu.core_type = #tpu.core_type<tc>, window_params = [{pipeline_mode = #tpu.pipeline_mode<synchronous>, transform_indices = @transform_0, window_bounds = array<i64: 8, 32>}, {pipeline_mode = #tpu.pipeline_mode<synchronous>, transform_indices = @transform_1, window_bounds = array<i64: 8, 32>}, {transform_indices = @transform_2, window_bounds = array<i64: 5, 8, 16>}, {pipeline_mode = #tpu.pipeline_mode<synchronous>, transform_indices = @transform_3, window_bounds = array<i64: 8, 16>}, {transform_indices = @transform_4, window_bounds = array<i64: 1, 1, 8>}]} {
    %c8_i32 = arith.constant 8 : i32
    %0 = arith.muli %arg0, %c8_i32 : i32
    %1 = tpu.assume_multiple %0, 8 : i32
    %c0 = arith.constant 0 : index
    %c0_0 = arith.constant 0 : index
    %2 = vector.load %arg1[%c0, %c0_0] : memref<8x32xf32, #tpu.memory_space<vmem>>, vector<8x32xf32>
    %c0_1 = arith.constant 0 : index
    %c0_2 = arith.constant 0 : index
    %3 = vector.load %arg2[%c0_1, %c0_2] : memref<8x32xf32, #tpu.memory_space<vmem>>, vector<8x32xf32>
    %4 = arith.index_cast %1 : i32 to index
    %c0_3 = arith.constant 0 : index
    %5 = vector.load %arg1[%4, %c0_3] : memref<8x32xf32, #tpu.memory_space<vmem>>, vector<8x32xf32>
    %6 = arith.index_cast %1 : i32 to index
    %c0_4 = arith.constant 0 : index
    %7 = vector.load %arg2[%6, %c0_4] : memref<8x32xf32, #tpu.memory_space<vmem>>, vector<8x32xf32>
    %cst = arith.constant dense<0.000000e+00> : vector<8x8xf32>
    %8 = tpu.matmul %3, %5, %cst {dimension_numbers = #tpu.dot_dimension_numbers<[1], [1], [0], [0], [0, 0, 1, 0], [], []>} : vector<8x32xf32>, vector<8x32xf32>, vector<8x8xf32> -> vector<8x8xf32>
    %cst_5 = arith.constant dense<0.000000e+00> : vector<8x8xf32>
    %9 = tpu.matmul %2, %7, %cst_5 {dimension_numbers = #tpu.dot_dimension_numbers<[1], [1], [0], [0], [0, 0, 1, 0], [], []>} : vector<8x32xf32>, vector<8x32xf32>, vector<8x8xf32> -> vector<8x8xf32>
    %10 = tpu.iota {dimensions = array<i32: 0>} : vector<8x8xi32>
    %11 = tpu.iota {dimensions = array<i32: 1>} : vector<8x8xi32>
    %12 = vector.broadcast %1 : i32 to vector<8x8xi32>
    %13 = arith.addi %11, %12 : vector<8x8xi32>
    %14 = arith.cmpi eq, %10, %13 : vector<8x8xi32>
    %cst_6 = arith.constant 0.000000e+00 : f32
    %15 = vector.broadcast %cst_6 : f32 to vector<8x8xf32>
    %16 = arith.select %14, %8, %15 : vector<8x8xi1>, vector<8x8xf32>
    %cst_7 = arith.constant dense<0.000000e+00> : vector<8xf32>
    %17 = vector.multi_reduction <add>, %16, %cst_7 [0] : vector<8x8xf32> to vector<8xf32>
    %18 = vector.shape_cast %17 : vector<8xf32> to vector<1x8xf32>
    %19 = vector.broadcast %18 : vector<1x8xf32> to vector<8x8xf32>
    %20 = arith.subf %8, %19 : vector<8x8xf32>
    %cst_8 = arith.constant 2.000000e-01 : f32
    %21 = vector.broadcast %cst_8 : f32 to vector<8x8xf32>
    %22 = arith.addf %20, %21 : vector<8x8xf32>
    %cst_9 = arith.constant 0.000000e+00 : f32
    %23 = vector.broadcast %cst_9 : f32 to vector<8x8xf32>
    %24 = arith.maximumf %22, %23 : vector<8x8xf32>
    %cst_10 = arith.constant 0.000000e+00 : f32
    %25 = vector.broadcast %cst_10 : f32 to vector<8x8xf32>
    %26 = arith.select %14, %25, %24 : vector<8x8xi1>, vector<8x8xf32>
    %cst_11 = arith.constant dense<0xFF800000> : vector<8xf32>
    %27 = vector.multi_reduction <maximumf>, %26, %cst_11 [0] : vector<8x8xf32> to vector<8xf32>
    %28 = vector.shape_cast %27 : vector<8xf32> to vector<1x8xf32>
    %29 = vector.broadcast %18 : vector<1x8xf32> to vector<8x8xf32>
    %30 = arith.subf %9, %29 : vector<8x8xf32>
    %cst_12 = arith.constant 2.000000e-01 : f32
    %31 = vector.broadcast %cst_12 : f32 to vector<8x8xf32>
    %32 = arith.addf %30, %31 : vector<8x8xf32>
    %cst_13 = arith.constant 0.000000e+00 : f32
    %33 = vector.broadcast %cst_13 : f32 to vector<8x8xf32>
    %34 = arith.maximumf %32, %33 : vector<8x8xf32>
    %cst_14 = arith.constant 0.000000e+00 : f32
    %35 = vector.broadcast %cst_14 : f32 to vector<8x8xf32>
    %36 = arith.select %14, %35, %34 : vector<8x8xi1>, vector<8x8xf32>
    %cst_15 = arith.constant dense<0xFF800000> : vector<8xf32>
    %37 = vector.multi_reduction <maximumf>, %36, %cst_15 [0] : vector<8x8xf32> to vector<8xf32>
    %38 = vector.shape_cast %37 : vector<8xf32> to vector<1x8xf32>
    %c0_16 = arith.constant 0 : index
    %c0_17 = arith.constant 0 : index
    %39 = vector.load %arg4[%c0_16, %c0_17] : memref<8x16xf32, #tpu.memory_space<vmem>>, vector<8x16xf32>
    %40 = arith.mulf %39, %39 : vector<8x16xf32>
    %cst_18 = arith.constant dense<0.000000e+00> : vector<8xf32>
    %41 = vector.multi_reduction <add>, %40, %cst_18 [1] : vector<8x16xf32> to vector<8xf32>
    %42 = vector.shape_cast %41 : vector<8xf32> to vector<8x1xf32>
    %43 = math.rsqrt %42 : vector<8x1xf32>
    %44 = vector.broadcast %43 : vector<8x1xf32> to vector<8x16xf32>
    %45 = arith.mulf %39, %44 : vector<8x16xf32>
    %c0_19 = arith.constant 0 : index
    %c0_20 = arith.constant 0 : index
    %c0_21 = arith.constant 0 : index
    %46 = vector.load %arg3[%c0_19, %c0_20, %c0_21] : memref<5x8x16xf32, #tpu.memory_space<vmem>>, vector<1x8x16xf32>
    %47 = vector.shape_cast %46 : vector<1x8x16xf32> to vector<8x16xf32>
    %48 = arith.mulf %47, %47 : vector<8x16xf32>
    %cst_22 = arith.constant dense<0.000000e+00> : vector<8xf32>
    %49 = vector.multi_reduction <add>, %48, %cst_22 [1] : vector<8x16xf32> to vector<8xf32>
    %50 = vector.shape_cast %49 : vector<8xf32> to vector<8x1xf32>
    %51 = math.rsqrt %50 : vector<8x1xf32>
    %52 = vector.broadcast %51 : vector<8x1xf32> to vector<8x16xf32>
    %53 = arith.mulf %47, %52 : vector<8x16xf32>
    %cst_23 = arith.constant dense<0.000000e+00> : vector<8x8xf32>
    %54 = tpu.matmul %45, %53, %cst_23 {dimension_numbers = #tpu.dot_dimension_numbers<[1], [1], [0], [0], [0, 0, 1, 0], [], []>} : vector<8x16xf32>, vector<8x16xf32>, vector<8x8xf32> -> vector<8x8xf32>
    %c1 = arith.constant 1 : index
    %c0_24 = arith.constant 0 : index
    %c0_25 = arith.constant 0 : index
    %55 = vector.load %arg3[%c1, %c0_24, %c0_25] : memref<5x8x16xf32, #tpu.memory_space<vmem>>, vector<1x8x16xf32>
    %56 = vector.shape_cast %55 : vector<1x8x16xf32> to vector<8x16xf32>
    %57 = arith.mulf %56, %56 : vector<8x16xf32>
    %cst_26 = arith.constant dense<0.000000e+00> : vector<8xf32>
    %58 = vector.multi_reduction <add>, %57, %cst_26 [1] : vector<8x16xf32> to vector<8xf32>
    %59 = vector.shape_cast %58 : vector<8xf32> to vector<8x1xf32>
    %60 = math.rsqrt %59 : vector<8x1xf32>
    %61 = vector.broadcast %60 : vector<8x1xf32> to vector<8x16xf32>
    %62 = arith.mulf %56, %61 : vector<8x16xf32>
    %cst_27 = arith.constant dense<0.000000e+00> : vector<8x8xf32>
    %63 = tpu.matmul %45, %62, %cst_27 {dimension_numbers = #tpu.dot_dimension_numbers<[1], [1], [0], [0], [0, 0, 1, 0], [], []>} : vector<8x16xf32>, vector<8x16xf32>, vector<8x8xf32> -> vector<8x8xf32>
    %64 = arith.maximumf %54, %63 : vector<8x8xf32>
    %c2 = arith.constant 2 : index
    %c0_28 = arith.constant 0 : index
    %c0_29 = arith.constant 0 : index
    %65 = vector.load %arg3[%c2, %c0_28, %c0_29] : memref<5x8x16xf32, #tpu.memory_space<vmem>>, vector<1x8x16xf32>
    %66 = vector.shape_cast %65 : vector<1x8x16xf32> to vector<8x16xf32>
    %67 = arith.mulf %66, %66 : vector<8x16xf32>
    %cst_30 = arith.constant dense<0.000000e+00> : vector<8xf32>
    %68 = vector.multi_reduction <add>, %67, %cst_30 [1] : vector<8x16xf32> to vector<8xf32>
    %69 = vector.shape_cast %68 : vector<8xf32> to vector<8x1xf32>
    %70 = math.rsqrt %69 : vector<8x1xf32>
    %71 = vector.broadcast %70 : vector<8x1xf32> to vector<8x16xf32>
    %72 = arith.mulf %66, %71 : vector<8x16xf32>
    %cst_31 = arith.constant dense<0.000000e+00> : vector<8x8xf32>
    %73 = tpu.matmul %45, %72, %cst_31 {dimension_numbers = #tpu.dot_dimension_numbers<[1], [1], [0], [0], [0, 0, 1, 0], [], []>} : vector<8x16xf32>, vector<8x16xf32>, vector<8x8xf32> -> vector<8x8xf32>
    %74 = arith.maximumf %64, %73 : vector<8x8xf32>
    %c3 = arith.constant 3 : index
    %c0_32 = arith.constant 0 : index
    %c0_33 = arith.constant 0 : index
    %75 = vector.load %arg3[%c3, %c0_32, %c0_33] : memref<5x8x16xf32, #tpu.memory_space<vmem>>, vector<1x8x16xf32>
    %76 = vector.shape_cast %75 : vector<1x8x16xf32> to vector<8x16xf32>
    %77 = arith.mulf %76, %76 : vector<8x16xf32>
    %cst_34 = arith.constant dense<0.000000e+00> : vector<8xf32>
    %78 = vector.multi_reduction <add>, %77, %cst_34 [1] : vector<8x16xf32> to vector<8xf32>
    %79 = vector.shape_cast %78 : vector<8xf32> to vector<8x1xf32>
    %80 = math.rsqrt %79 : vector<8x1xf32>
    %81 = vector.broadcast %80 : vector<8x1xf32> to vector<8x16xf32>
    %82 = arith.mulf %76, %81 : vector<8x16xf32>
    %cst_35 = arith.constant dense<0.000000e+00> : vector<8x8xf32>
    %83 = tpu.matmul %45, %82, %cst_35 {dimension_numbers = #tpu.dot_dimension_numbers<[1], [1], [0], [0], [0, 0, 1, 0], [], []>} : vector<8x16xf32>, vector<8x16xf32>, vector<8x8xf32> -> vector<8x8xf32>
    %84 = arith.maximumf %74, %83 : vector<8x8xf32>
    %c4 = arith.constant 4 : index
    %c0_36 = arith.constant 0 : index
    %c0_37 = arith.constant 0 : index
    %85 = vector.load %arg3[%c4, %c0_36, %c0_37] : memref<5x8x16xf32, #tpu.memory_space<vmem>>, vector<1x8x16xf32>
    %86 = vector.shape_cast %85 : vector<1x8x16xf32> to vector<8x16xf32>
    %87 = arith.mulf %86, %86 : vector<8x16xf32>
    %cst_38 = arith.constant dense<0.000000e+00> : vector<8xf32>
    %88 = vector.multi_reduction <add>, %87, %cst_38 [1] : vector<8x16xf32> to vector<8xf32>
    %89 = vector.shape_cast %88 : vector<8xf32> to vector<8x1xf32>
    %90 = math.rsqrt %89 : vector<8x1xf32>
    %91 = vector.broadcast %90 : vector<8x1xf32> to vector<8x16xf32>
    %92 = arith.mulf %86, %91 : vector<8x16xf32>
    %cst_39 = arith.constant dense<0.000000e+00> : vector<8x8xf32>
    %93 = tpu.matmul %45, %92, %cst_39 {dimension_numbers = #tpu.dot_dimension_numbers<[1], [1], [0], [0], [0, 0, 1, 0], [], []>} : vector<8x16xf32>, vector<8x16xf32>, vector<8x8xf32> -> vector<8x8xf32>
    %94 = arith.maximumf %84, %93 : vector<8x8xf32>
    %cst_40 = arith.constant 1.000000e+00 : f32
    %95 = vector.broadcast %cst_40 : f32 to vector<8x8xf32>
    %96 = arith.addf %95, %94 : vector<8x8xf32>
    %cst_41 = arith.constant 5.000000e-01 : f32
    %97 = vector.broadcast %cst_41 : f32 to vector<8x8xf32>
    %98 = arith.mulf %96, %97 : vector<8x8xf32>
    %cst_42 = arith.constant 1.000000e+00 : f32
    %99 = vector.broadcast %cst_42 : f32 to vector<8x8xf32>
    %100 = arith.select %14, %99, %98 : vector<8x8xi1>, vector<8x8xf32>
    %cst_43 = arith.constant 0.693147182 : f32
    %101 = vector.broadcast %cst_43 : f32 to vector<8x8xf32>
    %102 = arith.mulf %100, %101 : vector<8x8xf32>
    %103 = math.exp %102 : vector<8x8xf32>
    %cst_44 = arith.constant 1.000000e+00 : f32
    %104 = vector.broadcast %cst_44 : f32 to vector<8x8xf32>
    %105 = arith.subf %103, %104 : vector<8x8xf32>
    %cst_45 = arith.constant 5.000000e+00 : f32
    %106 = vector.broadcast %cst_45 : f32 to vector<8x8xf32>
    %107 = arith.mulf %8, %106 : vector<8x8xf32>
    %cst_46 = arith.constant 5.000000e+00 : f32
    %108 = vector.broadcast %cst_46 : f32 to vector<8x8xf32>
    %109 = arith.mulf %9, %108 : vector<8x8xf32>
    %c0_47 = arith.constant 0 : index
    %c0_48 = arith.constant 0 : index
    %110 = vector.load %arg6[%c0_47, %c0_48] : memref<8x8xf32, #tpu.memory_space<vmem>>, vector<8x8xf32>
    tpu.vector_store %arg6[%c0_47, %c0_48], %107 {strides = array<i32>} : memref<8x8xf32, #tpu.memory_space<vmem>>, vector<8x8xf32>,
    %c0_49 = arith.constant 0 : index
    %c0_50 = arith.constant 0 : index
    %111 = vector.load %arg7[%c0_49, %c0_50] : memref<8x8xf32, #tpu.memory_space<vmem>>, vector<8x8xf32>
    tpu.vector_store %arg7[%c0_49, %c0_50], %109 {strides = array<i32>} : memref<8x8xf32, #tpu.memory_space<vmem>>, vector<8x8xf32>,
    %c0_51 = arith.constant 0 : index
    %c0_52 = arith.constant 0 : index
    %112 = vector.load %arg8[%c0_51, %c0_52] : memref<8x8xf32, #tpu.memory_space<vmem>>, vector<8x8xf32>
    tpu.vector_store %arg8[%c0_51, %c0_52], %105 {strides = array<i32>} : memref<8x8xf32, #tpu.memory_space<vmem>>, vector<8x8xf32>,
    %cst_53 = arith.constant 0.000000e+00 : f32
    %113 = vector.broadcast %cst_53 : f32 to vector<1x8xf32>
    %c0_i32 = arith.constant 0 : i32
    %114 = arith.index_cast %c0_i32 : i32 to index
    %c0_54 = arith.constant 0 : index
    %115 = vector.load %arg6[%114, %c0_54] : memref<8x8xf32, #tpu.memory_space<vmem>>, vector<1x8xf32>
    %116 = arith.index_cast %c0_i32 : i32 to index
    %c0_55 = arith.constant 0 : index
    %117 = vector.load %arg7[%116, %c0_55] : memref<8x8xf32, #tpu.memory_space<vmem>>, vector<1x8xf32>
    %118 = arith.index_cast %c0_i32 : i32 to index
    %c0_56 = arith.constant 0 : index
    %119 = vector.load %arg8[%118, %c0_56] : memref<8x8xf32, #tpu.memory_space<vmem>>, vector<1x8xf32>
    %120 = vector.broadcast %115 : vector<1x8xf32> to vector<8x8xf32>
    %121 = arith.subf %107, %120 : vector<8x8xf32>
    %122 = vector.broadcast %117 : vector<1x8xf32> to vector<8x8xf32>
    %123 = arith.subf %109, %122 : vector<8x8xf32>
    %124 = vector.broadcast %119 : vector<1x8xf32> to vector<8x8xf32>
    %125 = arith.subf %105, %124 : vector<8x8xf32>
    %126 = math.tanh %121 : vector<8x8xf32>
    %cst_57 = arith.constant dense<0.000000e+00> : vector<8xf32>
    %127 = vector.multi_reduction <add>, %126, %cst_57 [0] : vector<8x8xf32> to vector<8xf32>
    %128 = vector.shape_cast %127 : vector<8xf32> to vector<1x8xf32>
    %129 = math.tanh %123 : vector<8x8xf32>
    %cst_58 = arith.constant dense<0.000000e+00> : vector<8xf32>
    %130 = vector.multi_reduction <add>, %129, %cst_58 [0] : vector<8x8xf32> to vector<8xf32>
    %131 = vector.shape_cast %130 : vector<8xf32> to vector<1x8xf32>
    %cst_59 = arith.constant 0.000000e+00 : f32
    %132 = vector.broadcast %cst_59 : f32 to vector<8x8xf32>
    %133 = arith.cmpf ogt, %121, %132 : vector<8x8xf32>
    %134 = arith.extui %133 : vector<8x8xi1> to vector<8x8xi32>
    %135 = arith.sitofp %134 : vector<8x8xi32> to vector<8x8xf32>
    %cst_60 = arith.constant dense<0.000000e+00> : vector<8xf32>
    %136 = vector.multi_reduction <add>, %135, %cst_60 [0] : vector<8x8xf32> to vector<8xf32>
    %137 = vector.shape_cast %136 : vector<8xf32> to vector<1x8xf32>
    %cst_61 = arith.constant 0.000000e+00 : f32
    %138 = vector.broadcast %cst_61 : f32 to vector<8x8xf32>
    %139 = arith.cmpf ogt, %123, %138 : vector<8x8xf32>
    %140 = arith.extui %139 : vector<8x8xi1> to vector<8x8xi32>
    %141 = arith.sitofp %140 : vector<8x8xi32> to vector<8x8xf32>
    %cst_62 = arith.constant dense<0.000000e+00> : vector<8xf32>
    %142 = vector.multi_reduction <add>, %141, %cst_62 [0] : vector<8x8xf32> to vector<8xf32>
    %143 = vector.shape_cast %142 : vector<8xf32> to vector<1x8xf32>
    %cst_63 = arith.constant 0.000000e+00 : f32
    %144 = vector.broadcast %cst_63 : f32 to vector<8x8xf32>
    %145 = arith.cmpf ogt, %125, %144 : vector<8x8xf32>
    %146 = arith.extui %145 : vector<8x8xi1> to vector<8x8xi32>
    %147 = arith.sitofp %146 : vector<8x8xi32> to vector<8x8xf32>
    %cst_64 = arith.constant dense<0.000000e+00> : vector<8xf32>
    %148 = vector.multi_reduction <add>, %147, %cst_64 [0] : vector<8x8xf32> to vector<8xf32>
    %149 = vector.shape_cast %148 : vector<8xf32> to vector<1x8xf32>
    %cst_65 = arith.constant 2.000000e+00 : f32
    %150 = vector.broadcast %cst_65 : f32 to vector<1x8xf32>
    %151 = arith.addf %149, %150 : vector<1x8xf32>
    %152 = math.log %151 : vector<1x8xf32>
    %153 = arith.divf %119, %152 : vector<1x8xf32>
    %154 = arith.addf %113, %153 : vector<1x8xf32>
    %cst_66 = arith.constant 5.000000e-01 : f32
    %155 = vector.broadcast %cst_66 : f32 to vector<1x8xf32>
    %156 = arith.mulf %155, %128 : vector<1x8xf32>
    %cst_67 = arith.constant 5.500000e+00 : f32
    %157 = vector.broadcast %cst_67 : f32 to vector<1x8xf32>
    %158 = arith.addf %156, %157 : vector<1x8xf32>
    %159 = math.log %158 : vector<1x8xf32>
    %160 = arith.divf %119, %159 : vector<1x8xf32>
    %161 = arith.addf %113, %160 : vector<1x8xf32>
    %cst_68 = arith.constant 2.000000e+00 : f32
    %162 = vector.broadcast %cst_68 : f32 to vector<1x8xf32>
    %163 = arith.addf %137, %162 : vector<1x8xf32>
    %164 = math.log %163 : vector<1x8xf32>
    %165 = arith.divf %119, %164 : vector<1x8xf32>
    %166 = arith.addf %113, %165 : vector<1x8xf32>
    %cst_69 = arith.constant 5.000000e-01 : f32
    %167 = vector.broadcast %cst_69 : f32 to vector<1x8xf32>
    %168 = arith.mulf %167, %131 : vector<1x8xf32>
    %cst_70 = arith.constant 5.500000e+00 : f32
    %169 = vector.broadcast %cst_70 : f32 to vector<1x8xf32>
    %170 = arith.addf %168, %169 : vector<1x8xf32>
    %171 = math.log %170 : vector<1x8xf32>
    %172 = arith.divf %119, %171 : vector<1x8xf32>
    %173 = arith.addf %113, %172 : vector<1x8xf32>
    %cst_71 = arith.constant 2.000000e+00 : f32
    %174 = vector.broadcast %cst_71 : f32 to vector<1x8xf32>
    %175 = arith.addf %143, %174 : vector<1x8xf32>
    %176 = math.log %175 : vector<1x8xf32>
    %177 = arith.divf %119, %176 : vector<1x8xf32>
    %178 = arith.addf %113, %177 : vector<1x8xf32>
    %c1_i32 = arith.constant 1 : i32
    %179 = arith.index_cast %c1_i32 : i32 to index
    %c0_72 = arith.constant 0 : index
    %180 = vector.load %arg6[%179, %c0_72] : memref<8x8xf32, #tpu.memory_space<vmem>>, vector<1x8xf32>
    %181 = arith.index_cast %c1_i32 : i32 to index
    %c0_73 = arith.constant 0 : index
    %182 = vector.load %arg7[%181, %c0_73] : memref<8x8xf32, #tpu.memory_space<vmem>>, vector<1x8xf32>
    %183 = arith.index_cast %c1_i32 : i32 to index
    %c0_74 = arith.constant 0 : index
    %184 = vector.load %arg8[%183, %c0_74] : memref<8x8xf32, #tpu.memory_space<vmem>>, vector<1x8xf32>
    %185 = vector.broadcast %180 : vector<1x8xf32> to vector<8x8xf32>
    %186 = arith.subf %107, %185 : vector<8x8xf32>
    %187 = vector.broadcast %182 : vector<1x8xf32> to vector<8x8xf32>
    %188 = arith.subf %109, %187 : vector<8x8xf32>
    %189 = vector.broadcast %184 : vector<1x8xf32> to vector<8x8xf32>
    %190 = arith.subf %105, %189 : vector<8x8xf32>
    %191 = math.tanh %186 : vector<8x8xf32>
    %cst_75 = arith.constant dense<0.000000e+00> : vector<8xf32>
    %192 = vector.multi_reduction <add>, %191, %cst_75 [0] : vector<8x8xf32> to vector<8xf32>
    %193 = vector.shape_cast %192 : vector<8xf32> to vector<1x8xf32>
    %194 = math.tanh %188 : vector<8x8xf32>
    %cst_76 = arith.constant dense<0.000000e+00> : vector<8xf32>
    %195 = vector.multi_reduction <add>, %194, %cst_76 [0] : vector<8x8xf32> to vector<8xf32>
    %196 = vector.shape_cast %195 : vector<8xf32> to vector<1x8xf32>
    %cst_77 = arith.constant 0.000000e+00 : f32
    %197 = vector.broadcast %cst_77 : f32 to vector<8x8xf32>
    %198 = arith.cmpf ogt, %186, %197 : vector<8x8xf32>
    %199 = arith.extui %198 : vector<8x8xi1> to vector<8x8xi32>
    %200 = arith.sitofp %199 : vector<8x8xi32> to vector<8x8xf32>
    %cst_78 = arith.constant dense<0.000000e+00> : vector<8xf32>
    %201 = vector.multi_reduction <add>, %200, %cst_78 [0] : vector<8x8xf32> to vector<8xf32>
    %202 = vector.shape_cast %201 : vector<8xf32> to vector<1x8xf32>
    %cst_79 = arith.constant 0.000000e+00 : f32
    %203 = vector.broadcast %cst_79 : f32 to vector<8x8xf32>
    %204 = arith.cmpf ogt, %188, %203 : vector<8x8xf32>
    %205 = arith.extui %204 : vector<8x8xi1> to vector<8x8xi32>
    %206 = arith.sitofp %205 : vector<8x8xi32> to vector<8x8xf32>
    %cst_80 = arith.constant dense<0.000000e+00> : vector<8xf32>
    %207 = vector.multi_reduction <add>, %206, %cst_80 [0] : vector<8x8xf32> to vector<8xf32>
    %208 = vector.shape_cast %207 : vector<8xf32> to vector<1x8xf32>
    %cst_81 = arith.constant 0.000000e+00 : f32
    %209 = vector.broadcast %cst_81 : f32 to vector<8x8xf32>
    %210 = arith.cmpf ogt, %190, %209 : vector<8x8xf32>
    %211 = arith.extui %210 : vector<8x8xi1> to vector<8x8xi32>
    %212 = arith.sitofp %211 : vector<8x8xi32> to vector<8x8xf32>
    %cst_82 = arith.constant dense<0.000000e+00> : vector<8xf32>
    %213 = vector.multi_reduction <add>, %212, %cst_82 [0] : vector<8x8xf32> to vector<8xf32>
    %214 = vector.shape_cast %213 : vector<8xf32> to vector<1x8xf32>
    %cst_83 = arith.constant 2.000000e+00 : f32
    %215 = vector.broadcast %cst_83 : f32 to vector<1x8xf32>
    %216 = arith.addf %214, %215 : vector<1x8xf32>
    %217 = math.log %216 : vector<1x8xf32>
    %218 = arith.divf %184, %217 : vector<1x8xf32>
    %219 = arith.addf %154, %218 : vector<1x8xf32>
    %cst_84 = arith.constant 5.000000e-01 : f32
    %220 = vector.broadcast %cst_84 : f32 to vector<1x8xf32>
    %221 = arith.mulf %220, %193 : vector<1x8xf32>
    %cst_85 = arith.constant 5.500000e+00 : f32
    %222 = vector.broadcast %cst_85 : f32 to vector<1x8xf32>
    %223 = arith.addf %221, %222 : vector<1x8xf32>
    %224 = math.log %223 : vector<1x8xf32>
    %225 = arith.divf %184, %224 : vector<1x8xf32>
    %226 = arith.addf %161, %225 : vector<1x8xf32>
    %cst_86 = arith.constant 2.000000e+00 : f32
    %227 = vector.broadcast %cst_86 : f32 to vector<1x8xf32>
    %228 = arith.addf %202, %227 : vector<1x8xf32>
    %229 = math.log %228 : vector<1x8xf32>
    %230 = arith.divf %184, %229 : vector<1x8xf32>
    %231 = arith.addf %166, %230 : vector<1x8xf32>
    %cst_87 = arith.constant 5.000000e-01 : f32
    %232 = vector.broadcast %cst_87 : f32 to vector<1x8xf32>
    %233 = arith.mulf %232, %196 : vector<1x8xf32>
    %cst_88 = arith.constant 5.500000e+00 : f32
    %234 = vector.broadcast %cst_88 : f32 to vector<1x8xf32>
    %235 = arith.addf %233, %234 : vector<1x8xf32>
    %236 = math.log %235 : vector<1x8xf32>
    %237 = arith.divf %184, %236 : vector<1x8xf32>
    %238 = arith.addf %173, %237 : vector<1x8xf32>
    %cst_89 = arith.constant 2.000000e+00 : f32
    %239 = vector.broadcast %cst_89 : f32 to vector<1x8xf32>
    %240 = arith.addf %208, %239 : vector<1x8xf32>
    %241 = math.log %240 : vector<1x8xf32>
    %242 = arith.divf %184, %241 : vector<1x8xf32>
    %243 = arith.addf %178, %242 : vector<1x8xf32>
    %c2_i32 = arith.constant 2 : i32
    %244 = arith.index_cast %c2_i32 : i32 to index
    %c0_90 = arith.constant 0 : index
    %245 = vector.load %arg6[%244, %c0_90] : memref<8x8xf32, #tpu.memory_space<vmem>>, vector<1x8xf32>
    %246 = arith.index_cast %c2_i32 : i32 to index
    %c0_91 = arith.constant 0 : index
    %247 = vector.load %arg7[%246, %c0_91] : memref<8x8xf32, #tpu.memory_space<vmem>>, vector<1x8xf32>
    %248 = arith.index_cast %c2_i32 : i32 to index
    %c0_92 = arith.constant 0 : index
    %249 = vector.load %arg8[%248, %c0_92] : memref<8x8xf32, #tpu.memory_space<vmem>>, vector<1x8xf32>
    %250 = vector.broadcast %245 : vector<1x8xf32> to vector<8x8xf32>
    %251 = arith.subf %107, %250 : vector<8x8xf32>
    %252 = vector.broadcast %247 : vector<1x8xf32> to vector<8x8xf32>
    %253 = arith.subf %109, %252 : vector<8x8xf32>
    %254 = vector.broadcast %249 : vector<1x8xf32> to vector<8x8xf32>
    %255 = arith.subf %105, %254 : vector<8x8xf32>
    %256 = math.tanh %251 : vector<8x8xf32>
    %cst_93 = arith.constant dense<0.000000e+00> : vector<8xf32>
    %257 = vector.multi_reduction <add>, %256, %cst_93 [0] : vector<8x8xf32> to vector<8xf32>
    %258 = vector.shape_cast %257 : vector<8xf32> to vector<1x8xf32>
    %259 = math.tanh %253 : vector<8x8xf32>
    %cst_94 = arith.constant dense<0.000000e+00> : vector<8xf32>
    %260 = vector.multi_reduction <add>, %259, %cst_94 [0] : vector<8x8xf32> to vector<8xf32>
    %261 = vector.shape_cast %260 : vector<8xf32> to vector<1x8xf32>
    %cst_95 = arith.constant 0.000000e+00 : f32
    %262 = vector.broadcast %cst_95 : f32 to vector<8x8xf32>
    %263 = arith.cmpf ogt, %251, %262 : vector<8x8xf32>
    %264 = arith.extui %263 : vector<8x8xi1> to vector<8x8xi32>
    %265 = arith.sitofp %264 : vector<8x8xi32> to vector<8x8xf32>
    %cst_96 = arith.constant dense<0.000000e+00> : vector<8xf32>
    %266 = vector.multi_reduction <add>, %265, %cst_96 [0] : vector<8x8xf32> to vector<8xf32>
    %267 = vector.shape_cast %266 : vector<8xf32> to vector<1x8xf32>
    %cst_97 = arith.constant 0.000000e+00 : f32
    %268 = vector.broadcast %cst_97 : f32 to vector<8x8xf32>
    %269 = arith.cmpf ogt, %253, %268 : vector<8x8xf32>
    %270 = arith.extui %269 : vector<8x8xi1> to vector<8x8xi32>
    %271 = arith.sitofp %270 : vector<8x8xi32> to vector<8x8xf32>
    %cst_98 = arith.constant dense<0.000000e+00> : vector<8xf32>
    %272 = vector.multi_reduction <add>, %271, %cst_98 [0] : vector<8x8xf32> to vector<8xf32>
    %273 = vector.shape_cast %272 : vector<8xf32> to vector<1x8xf32>
    %cst_99 = arith.constant 0.000000e+00 : f32
    %274 = vector.broadcast %cst_99 : f32 to vector<8x8xf32>
    %275 = arith.cmpf ogt, %255, %274 : vector<8x8xf32>
    %276 = arith.extui %275 : vector<8x8xi1> to vector<8x8xi32>
    %277 = arith.sitofp %276 : vector<8x8xi32> to vector<8x8xf32>
    %cst_100 = arith.constant dense<0.000000e+00> : vector<8xf32>
    %278 = vector.multi_reduction <add>, %277, %cst_100 [0] : vector<8x8xf32> to vector<8xf32>
    %279 = vector.shape_cast %278 : vector<8xf32> to vector<1x8xf32>
    %cst_101 = arith.constant 2.000000e+00 : f32
    %280 = vector.broadcast %cst_101 : f32 to vector<1x8xf32>
    %281 = arith.addf %279, %280 : vector<1x8xf32>
    %282 = math.log %281 : vector<1x8xf32>
    %283 = arith.divf %249, %282 : vector<1x8xf32>
    %284 = arith.addf %219, %283 : vector<1x8xf32>
    %cst_102 = arith.constant 5.000000e-01 : f32
    %285 = vector.broadcast %cst_102 : f32 to vector<1x8xf32>
    %286 = arith.mulf %285, %258 : vector<1x8xf32>
    %cst_103 = arith.constant 5.500000e+00 : f32
    %287 = vector.broadcast %cst_103 : f32 to vector<1x8xf32>
    %288 = arith.addf %286, %287 : vector<1x8xf32>
    %289 = math.log %288 : vector<1x8xf32>
    %290 = arith.divf %249, %289 : vector<1x8xf32>
    %291 = arith.addf %226, %290 : vector<1x8xf32>
    %cst_104 = arith.constant 2.000000e+00 : f32
    %292 = vector.broadcast %cst_104 : f32 to vector<1x8xf32>
    %293 = arith.addf %267, %292 : vector<1x8xf32>
    %294 = math.log %293 : vector<1x8xf32>
    %295 = arith.divf %249, %294 : vector<1x8xf32>
    %296 = arith.addf %231, %295 : vector<1x8xf32>
    %cst_105 = arith.constant 5.000000e-01 : f32
    %297 = vector.broadcast %cst_105 : f32 to vector<1x8xf32>
    %298 = arith.mulf %297, %261 : vector<1x8xf32>
    %cst_106 = arith.constant 5.500000e+00 : f32
    %299 = vector.broadcast %cst_106 : f32 to vector<1x8xf32>
    %300 = arith.addf %298, %299 : vector<1x8xf32>
    %301 = math.log %300 : vector<1x8xf32>
    %302 = arith.divf %249, %301 : vector<1x8xf32>
    %303 = arith.addf %238, %302 : vector<1x8xf32>
    %cst_107 = arith.constant 2.000000e+00 : f32
    %304 = vector.broadcast %cst_107 : f32 to vector<1x8xf32>
    %305 = arith.addf %273, %304 : vector<1x8xf32>
    %306 = math.log %305 : vector<1x8xf32>
    %307 = arith.divf %249, %306 : vector<1x8xf32>
    %308 = arith.addf %243, %307 : vector<1x8xf32>
    %c3_i32 = arith.constant 3 : i32
    %309 = arith.index_cast %c3_i32 : i32 to index
    %c0_108 = arith.constant 0 : index
    %310 = vector.load %arg6[%309, %c0_108] : memref<8x8xf32, #tpu.memory_space<vmem>>, vector<1x8xf32>
    %311 = arith.index_cast %c3_i32 : i32 to index
    %c0_109 = arith.constant 0 : index
    %312 = vector.load %arg7[%311, %c0_109] : memref<8x8xf32, #tpu.memory_space<vmem>>, vector<1x8xf32>
    %313 = arith.index_cast %c3_i32 : i32 to index
    %c0_110 = arith.constant 0 : index
    %314 = vector.load %arg8[%313, %c0_110] : memref<8x8xf32, #tpu.memory_space<vmem>>, vector<1x8xf32>
    %315 = vector.broadcast %310 : vector<1x8xf32> to vector<8x8xf32>
    %316 = arith.subf %107, %315 : vector<8x8xf32>
    %317 = vector.broadcast %312 : vector<1x8xf32> to vector<8x8xf32>
    %318 = arith.subf %109, %317 : vector<8x8xf32>
    %319 = vector.broadcast %314 : vector<1x8xf32> to vector<8x8xf32>
    %320 = arith.subf %105, %319 : vector<8x8xf32>
    %321 = math.tanh %316 : vector<8x8xf32>
    %cst_111 = arith.constant dense<0.000000e+00> : vector<8xf32>
    %322 = vector.multi_reduction <add>, %321, %cst_111 [0] : vector<8x8xf32> to vector<8xf32>
    %323 = vector.shape_cast %322 : vector<8xf32> to vector<1x8xf32>
    %324 = math.tanh %318 : vector<8x8xf32>
    %cst_112 = arith.constant dense<0.000000e+00> : vector<8xf32>
    %325 = vector.multi_reduction <add>, %324, %cst_112 [0] : vector<8x8xf32> to vector<8xf32>
    %326 = vector.shape_cast %325 : vector<8xf32> to vector<1x8xf32>
    %cst_113 = arith.constant 0.000000e+00 : f32
    %327 = vector.broadcast %cst_113 : f32 to vector<8x8xf32>
    %328 = arith.cmpf ogt, %316, %327 : vector<8x8xf32>
    %329 = arith.extui %328 : vector<8x8xi1> to vector<8x8xi32>
    %330 = arith.sitofp %329 : vector<8x8xi32> to vector<8x8xf32>
    %cst_114 = arith.constant dense<0.000000e+00> : vector<8xf32>
    %331 = vector.multi_reduction <add>, %330, %cst_114 [0] : vector<8x8xf32> to vector<8xf32>
    %332 = vector.shape_cast %331 : vector<8xf32> to vector<1x8xf32>
    %cst_115 = arith.constant 0.000000e+00 : f32
    %333 = vector.broadcast %cst_115 : f32 to vector<8x8xf32>
    %334 = arith.cmpf ogt, %318, %333 : vector<8x8xf32>
    %335 = arith.extui %334 : vector<8x8xi1> to vector<8x8xi32>
    %336 = arith.sitofp %335 : vector<8x8xi32> to vector<8x8xf32>
    %cst_116 = arith.constant dense<0.000000e+00> : vector<8xf32>
    %337 = vector.multi_reduction <add>, %336, %cst_116 [0] : vector<8x8xf32> to vector<8xf32>
    %338 = vector.shape_cast %337 : vector<8xf32> to vector<1x8xf32>
    %cst_117 = arith.constant 0.000000e+00 : f32
    %339 = vector.broadcast %cst_117 : f32 to vector<8x8xf32>
    %340 = arith.cmpf ogt, %320, %339 : vector<8x8xf32>
    %341 = arith.extui %340 : vector<8x8xi1> to vector<8x8xi32>
    %342 = arith.sitofp %341 : vector<8x8xi32> to vector<8x8xf32>
    %cst_118 = arith.constant dense<0.000000e+00> : vector<8xf32>
    %343 = vector.multi_reduction <add>, %342, %cst_118 [0] : vector<8x8xf32> to vector<8xf32>
    %344 = vector.shape_cast %343 : vector<8xf32> to vector<1x8xf32>
    %cst_119 = arith.constant 2.000000e+00 : f32
    %345 = vector.broadcast %cst_119 : f32 to vector<1x8xf32>
    %346 = arith.addf %344, %345 : vector<1x8xf32>
    %347 = math.log %346 : vector<1x8xf32>
    %348 = arith.divf %314, %347 : vector<1x8xf32>
    %349 = arith.addf %284, %348 : vector<1x8xf32>
    %cst_120 = arith.constant 5.000000e-01 : f32
    %350 = vector.broadcast %cst_120 : f32 to vector<1x8xf32>
    %351 = arith.mulf %350, %323 : vector<1x8xf32>
    %cst_121 = arith.constant 5.500000e+00 : f32
    %352 = vector.broadcast %cst_121 : f32 to vector<1x8xf32>
    %353 = arith.addf %351, %352 : vector<1x8xf32>
    %354 = math.log %353 : vector<1x8xf32>
    %355 = arith.divf %314, %354 : vector<1x8xf32>
    %356 = arith.addf %291, %355 : vector<1x8xf32>
    %cst_122 = arith.constant 2.000000e+00 : f32
    %357 = vector.broadcast %cst_122 : f32 to vector<1x8xf32>
    %358 = arith.addf %332, %357 : vector<1x8xf32>
    %359 = math.log %358 : vector<1x8xf32>
    %360 = arith.divf %314, %359 : vector<1x8xf32>
    %361 = arith.addf %296, %360 : vector<1x8xf32>
    %cst_123 = arith.constant 5.000000e-01 : f32
    %362 = vector.broadcast %cst_123 : f32 to vector<1x8xf32>
    %363 = arith.mulf %362, %326 : vector<1x8xf32>
    %cst_124 = arith.constant 5.500000e+00 : f32
    %364 = vector.broadcast %cst_124 : f32 to vector<1x8xf32>
    %365 = arith.addf %363, %364 : vector<1x8xf32>
    %366 = math.log %365 : vector<1x8xf32>
    %367 = arith.divf %314, %366 : vector<1x8xf32>
    %368 = arith.addf %303, %367 : vector<1x8xf32>
    %cst_125 = arith.constant 2.000000e+00 : f32
    %369 = vector.broadcast %cst_125 : f32 to vector<1x8xf32>
    %370 = arith.addf %338, %369 : vector<1x8xf32>
    %371 = math.log %370 : vector<1x8xf32>
    %372 = arith.divf %314, %371 : vector<1x8xf32>
    %373 = arith.addf %308, %372 : vector<1x8xf32>
    %c4_i32 = arith.constant 4 : i32
    %374 = arith.index_cast %c4_i32 : i32 to index
    %c0_126 = arith.constant 0 : index
    %375 = vector.load %arg6[%374, %c0_126] : memref<8x8xf32, #tpu.memory_space<vmem>>, vector<1x8xf32>
    %376 = arith.index_cast %c4_i32 : i32 to index
    %c0_127 = arith.constant 0 : index
    %377 = vector.load %arg7[%376, %c0_127] : memref<8x8xf32, #tpu.memory_space<vmem>>, vector<1x8xf32>
    %378 = arith.index_cast %c4_i32 : i32 to index
    %c0_128 = arith.constant 0 : index
    %379 = vector.load %arg8[%378, %c0_128] : memref<8x8xf32, #tpu.memory_space<vmem>>, vector<1x8xf32>
    %380 = vector.broadcast %375 : vector<1x8xf32> to vector<8x8xf32>
    %381 = arith.subf %107, %380 : vector<8x8xf32>
    %382 = vector.broadcast %377 : vector<1x8xf32> to vector<8x8xf32>
    %383 = arith.subf %109, %382 : vector<8x8xf32>
    %384 = vector.broadcast %379 : vector<1x8xf32> to vector<8x8xf32>
    %385 = arith.subf %105, %384 : vector<8x8xf32>
    %386 = math.tanh %381 : vector<8x8xf32>
    %cst_129 = arith.constant dense<0.000000e+00> : vector<8xf32>
    %387 = vector.multi_reduction <add>, %386, %cst_129 [0] : vector<8x8xf32> to vector<8xf32>
    %388 = vector.shape_cast %387 : vector<8xf32> to vector<1x8xf32>
    %389 = math.tanh %383 : vector<8x8xf32>
    %cst_130 = arith.constant dense<0.000000e+00> : vector<8xf32>
    %390 = vector.multi_reduction <add>, %389, %cst_130 [0] : vector<8x8xf32> to vector<8xf32>
    %391 = vector.shape_cast %390 : vector<8xf32> to vector<1x8xf32>
    %cst_131 = arith.constant 0.000000e+00 : f32
    %392 = vector.broadcast %cst_131 : f32 to vector<8x8xf32>
    %393 = arith.cmpf ogt, %381, %392 : vector<8x8xf32>
    %394 = arith.extui %393 : vector<8x8xi1> to vector<8x8xi32>
    %395 = arith.sitofp %394 : vector<8x8xi32> to vector<8x8xf32>
    %cst_132 = arith.constant dense<0.000000e+00> : vector<8xf32>
    %396 = vector.multi_reduction <add>, %395, %cst_132 [0] : vector<8x8xf32> to vector<8xf32>
    %397 = vector.shape_cast %396 : vector<8xf32> to vector<1x8xf32>
    %cst_133 = arith.constant 0.000000e+00 : f32
    %398 = vector.broadcast %cst_133 : f32 to vector<8x8xf32>
    %399 = arith.cmpf ogt, %383, %398 : vector<8x8xf32>
    %400 = arith.extui %399 : vector<8x8xi1> to vector<8x8xi32>
    %401 = arith.sitofp %400 : vector<8x8xi32> to vector<8x8xf32>
    %cst_134 = arith.constant dense<0.000000e+00> : vector<8xf32>
    %402 = vector.multi_reduction <add>, %401, %cst_134 [0] : vector<8x8xf32> to vector<8xf32>
    %403 = vector.shape_cast %402 : vector<8xf32> to vector<1x8xf32>
    %cst_135 = arith.constant 0.000000e+00 : f32
    %404 = vector.broadcast %cst_135 : f32 to vector<8x8xf32>
    %405 = arith.cmpf ogt, %385, %404 : vector<8x8xf32>
    %406 = arith.extui %405 : vector<8x8xi1> to vector<8x8xi32>
    %407 = arith.sitofp %406 : vector<8x8xi32> to vector<8x8xf32>
    %cst_136 = arith.constant dense<0.000000e+00> : vector<8xf32>
    %408 = vector.multi_reduction <add>, %407, %cst_136 [0] : vector<8x8xf32> to vector<8xf32>
    %409 = vector.shape_cast %408 : vector<8xf32> to vector<1x8xf32>
    %cst_137 = arith.constant 2.000000e+00 : f32
    %410 = vector.broadcast %cst_137 : f32 to vector<1x8xf32>
    %411 = arith.addf %409, %410 : vector<1x8xf32>
    %412 = math.log %411 : vector<1x8xf32>
    %413 = arith.divf %379, %412 : vector<1x8xf32>
    %414 = arith.addf %349, %413 : vector<1x8xf32>
    %cst_138 = arith.constant 5.000000e-01 : f32
    %415 = vector.broadcast %cst_138 : f32 to vector<1x8xf32>
    %416 = arith.mulf %415, %388 : vector<1x8xf32>
    %cst_139 = arith.constant 5.500000e+00 : f32
    %417 = vector.broadcast %cst_139 : f32 to vector<1x8xf32>
    %418 = arith.addf %416, %417 : vector<1x8xf32>
    %419 = math.log %418 : vector<1x8xf32>
    %420 = arith.divf %379, %419 : vector<1x8xf32>
    %421 = arith.addf %356, %420 : vector<1x8xf32>
    %cst_140 = arith.constant 2.000000e+00 : f32
    %422 = vector.broadcast %cst_140 : f32 to vector<1x8xf32>
    %423 = arith.addf %397, %422 : vector<1x8xf32>
    %424 = math.log %423 : vector<1x8xf32>
    %425 = arith.divf %379, %424 : vector<1x8xf32>
    %426 = arith.addf %361, %425 : vector<1x8xf32>
    %cst_141 = arith.constant 5.000000e-01 : f32
    %427 = vector.broadcast %cst_141 : f32 to vector<1x8xf32>
    %428 = arith.mulf %427, %391 : vector<1x8xf32>
    %cst_142 = arith.constant 5.500000e+00 : f32
    %429 = vector.broadcast %cst_142 : f32 to vector<1x8xf32>
    %430 = arith.addf %428, %429 : vector<1x8xf32>
    %431 = math.log %430 : vector<1x8xf32>
    %432 = arith.divf %379, %431 : vector<1x8xf32>
    %433 = arith.addf %368, %432 : vector<1x8xf32>
    %cst_143 = arith.constant 2.000000e+00 : f32
    %434 = vector.broadcast %cst_143 : f32 to vector<1x8xf32>
    %435 = arith.addf %403, %434 : vector<1x8xf32>
    %436 = math.log %435 : vector<1x8xf32>
    %437 = arith.divf %379, %436 : vector<1x8xf32>
    %438 = arith.addf %373, %437 : vector<1x8xf32>
    %c5_i32 = arith.constant 5 : i32
    %439 = arith.index_cast %c5_i32 : i32 to index
    %c0_144 = arith.constant 0 : index
    %440 = vector.load %arg6[%439, %c0_144] : memref<8x8xf32, #tpu.memory_space<vmem>>, vector<1x8xf32>
    %441 = arith.index_cast %c5_i32 : i32 to index
    %c0_145 = arith.constant 0 : index
    %442 = vector.load %arg7[%441, %c0_145] : memref<8x8xf32, #tpu.memory_space<vmem>>, vector<1x8xf32>
    %443 = arith.index_cast %c5_i32 : i32 to index
    %c0_146 = arith.constant 0 : index
    %444 = vector.load %arg8[%443, %c0_146] : memref<8x8xf32, #tpu.memory_space<vmem>>, vector<1x8xf32>
    %445 = vector.broadcast %440 : vector<1x8xf32> to vector<8x8xf32>
    %446 = arith.subf %107, %445 : vector<8x8xf32>
    %447 = vector.broadcast %442 : vector<1x8xf32> to vector<8x8xf32>
    %448 = arith.subf %109, %447 : vector<8x8xf32>
    %449 = vector.broadcast %444 : vector<1x8xf32> to vector<8x8xf32>
    %450 = arith.subf %105, %449 : vector<8x8xf32>
    %451 = math.tanh %446 : vector<8x8xf32>
    %cst_147 = arith.constant dense<0.000000e+00> : vector<8xf32>
    %452 = vector.multi_reduction <add>, %451, %cst_147 [0] : vector<8x8xf32> to vector<8xf32>
    %453 = vector.shape_cast %452 : vector<8xf32> to vector<1x8xf32>
    %454 = math.tanh %448 : vector<8x8xf32>
    %cst_148 = arith.constant dense<0.000000e+00> : vector<8xf32>
    %455 = vector.multi_reduction <add>, %454, %cst_148 [0] : vector<8x8xf32> to vector<8xf32>
    %456 = vector.shape_cast %455 : vector<8xf32> to vector<1x8xf32>
    %cst_149 = arith.constant 0.000000e+00 : f32
    %457 = vector.broadcast %cst_149 : f32 to vector<8x8xf32>
    %458 = arith.cmpf ogt, %446, %457 : vector<8x8xf32>
    %459 = arith.extui %458 : vector<8x8xi1> to vector<8x8xi32>
    %460 = arith.sitofp %459 : vector<8x8xi32> to vector<8x8xf32>
    %cst_150 = arith.constant dense<0.000000e+00> : vector<8xf32>
    %461 = vector.multi_reduction <add>, %460, %cst_150 [0] : vector<8x8xf32> to vector<8xf32>
    %462 = vector.shape_cast %461 : vector<8xf32> to vector<1x8xf32>
    %cst_151 = arith.constant 0.000000e+00 : f32
    %463 = vector.broadcast %cst_151 : f32 to vector<8x8xf32>
    %464 = arith.cmpf ogt, %448, %463 : vector<8x8xf32>
    %465 = arith.extui %464 : vector<8x8xi1> to vector<8x8xi32>
    %466 = arith.sitofp %465 : vector<8x8xi32> to vector<8x8xf32>
    %cst_152 = arith.constant dense<0.000000e+00> : vector<8xf32>
    %467 = vector.multi_reduction <add>, %466, %cst_152 [0] : vector<8x8xf32> to vector<8xf32>
    %468 = vector.shape_cast %467 : vector<8xf32> to vector<1x8xf32>
    %cst_153 = arith.constant 0.000000e+00 : f32
    %469 = vector.broadcast %cst_153 : f32 to vector<8x8xf32>
    %470 = arith.cmpf ogt, %450, %469 : vector<8x8xf32>
    %471 = arith.extui %470 : vector<8x8xi1> to vector<8x8xi32>
    %472 = arith.sitofp %471 : vector<8x8xi32> to vector<8x8xf32>
    %cst_154 = arith.constant dense<0.000000e+00> : vector<8xf32>
    %473 = vector.multi_reduction <add>, %472, %cst_154 [0] : vector<8x8xf32> to vector<8xf32>
    %474 = vector.shape_cast %473 : vector<8xf32> to vector<1x8xf32>
    %cst_155 = arith.constant 2.000000e+00 : f32
    %475 = vector.broadcast %cst_155 : f32 to vector<1x8xf32>
    %476 = arith.addf %474, %475 : vector<1x8xf32>
    %477 = math.log %476 : vector<1x8xf32>
    %478 = arith.divf %444, %477 : vector<1x8xf32>
    %479 = arith.addf %414, %478 : vector<1x8xf32>
    %cst_156 = arith.constant 5.000000e-01 : f32
    %480 = vector.broadcast %cst_156 : f32 to vector<1x8xf32>
    %481 = arith.mulf %480, %453 : vector<1x8xf32>
    %cst_157 = arith.constant 5.500000e+00 : f32
    %482 = vector.broadcast %cst_157 : f32 to vector<1x8xf32>
    %483 = arith.addf %481, %482 : vector<1x8xf32>
    %484 = math.log %483 : vector<1x8xf32>
    %485 = arith.divf %444, %484 : vector<1x8xf32>
    %486 = arith.addf %421, %485 : vector<1x8xf32>
    %cst_158 = arith.constant 2.000000e+00 : f32
    %487 = vector.broadcast %cst_158 : f32 to vector<1x8xf32>
    %488 = arith.addf %462, %487 : vector<1x8xf32>
    %489 = math.log %488 : vector<1x8xf32>
    %490 = arith.divf %444, %489 : vector<1x8xf32>
    %491 = arith.addf %426, %490 : vector<1x8xf32>
    %cst_159 = arith.constant 5.000000e-01 : f32
    %492 = vector.broadcast %cst_159 : f32 to vector<1x8xf32>
    %493 = arith.mulf %492, %456 : vector<1x8xf32>
    %cst_160 = arith.constant 5.500000e+00 : f32
    %494 = vector.broadcast %cst_160 : f32 to vector<1x8xf32>
    %495 = arith.addf %493, %494 : vector<1x8xf32>
    %496 = math.log %495 : vector<1x8xf32>
    %497 = arith.divf %444, %496 : vector<1x8xf32>
    %498 = arith.addf %433, %497 : vector<1x8xf32>
    %cst_161 = arith.constant 2.000000e+00 : f32
    %499 = vector.broadcast %cst_161 : f32 to vector<1x8xf32>
    %500 = arith.addf %468, %499 : vector<1x8xf32>
    %501 = math.log %500 : vector<1x8xf32>
    %502 = arith.divf %444, %501 : vector<1x8xf32>
    %503 = arith.addf %438, %502 : vector<1x8xf32>
    %c6_i32 = arith.constant 6 : i32
    %504 = arith.index_cast %c6_i32 : i32 to index
    %c0_162 = arith.constant 0 : index
    %505 = vector.load %arg6[%504, %c0_162] : memref<8x8xf32, #tpu.memory_space<vmem>>, vector<1x8xf32>
    %506 = arith.index_cast %c6_i32 : i32 to index
    %c0_163 = arith.constant 0 : index
    %507 = vector.load %arg7[%506, %c0_163] : memref<8x8xf32, #tpu.memory_space<vmem>>, vector<1x8xf32>
    %508 = arith.index_cast %c6_i32 : i32 to index
    %c0_164 = arith.constant 0 : index
    %509 = vector.load %arg8[%508, %c0_164] : memref<8x8xf32, #tpu.memory_space<vmem>>, vector<1x8xf32>
    %510 = vector.broadcast %505 : vector<1x8xf32> to vector<8x8xf32>
    %511 = arith.subf %107, %510 : vector<8x8xf32>
    %512 = vector.broadcast %507 : vector<1x8xf32> to vector<8x8xf32>
    %513 = arith.subf %109, %512 : vector<8x8xf32>
    %514 = vector.broadcast %509 : vector<1x8xf32> to vector<8x8xf32>
    %515 = arith.subf %105, %514 : vector<8x8xf32>
    %516 = math.tanh %511 : vector<8x8xf32>
    %cst_165 = arith.constant dense<0.000000e+00> : vector<8xf32>
    %517 = vector.multi_reduction <add>, %516, %cst_165 [0] : vector<8x8xf32> to vector<8xf32>
    %518 = vector.shape_cast %517 : vector<8xf32> to vector<1x8xf32>
    %519 = math.tanh %513 : vector<8x8xf32>
    %cst_166 = arith.constant dense<0.000000e+00> : vector<8xf32>
    %520 = vector.multi_reduction <add>, %519, %cst_166 [0] : vector<8x8xf32> to vector<8xf32>
    %521 = vector.shape_cast %520 : vector<8xf32> to vector<1x8xf32>
    %cst_167 = arith.constant 0.000000e+00 : f32
    %522 = vector.broadcast %cst_167 : f32 to vector<8x8xf32>
    %523 = arith.cmpf ogt, %511, %522 : vector<8x8xf32>
    %524 = arith.extui %523 : vector<8x8xi1> to vector<8x8xi32>
    %525 = arith.sitofp %524 : vector<8x8xi32> to vector<8x8xf32>
    %cst_168 = arith.constant dense<0.000000e+00> : vector<8xf32>
    %526 = vector.multi_reduction <add>, %525, %cst_168 [0] : vector<8x8xf32> to vector<8xf32>
    %527 = vector.shape_cast %526 : vector<8xf32> to vector<1x8xf32>
    %cst_169 = arith.constant 0.000000e+00 : f32
    %528 = vector.broadcast %cst_169 : f32 to vector<8x8xf32>
    %529 = arith.cmpf ogt, %513, %528 : vector<8x8xf32>
    %530 = arith.extui %529 : vector<8x8xi1> to vector<8x8xi32>
    %531 = arith.sitofp %530 : vector<8x8xi32> to vector<8x8xf32>
    %cst_170 = arith.constant dense<0.000000e+00> : vector<8xf32>
    %532 = vector.multi_reduction <add>, %531, %cst_170 [0] : vector<8x8xf32> to vector<8xf32>
    %533 = vector.shape_cast %532 : vector<8xf32> to vector<1x8xf32>
    %cst_171 = arith.constant 0.000000e+00 : f32
    %534 = vector.broadcast %cst_171 : f32 to vector<8x8xf32>
    %535 = arith.cmpf ogt, %515, %534 : vector<8x8xf32>
    %536 = arith.extui %535 : vector<8x8xi1> to vector<8x8xi32>
    %537 = arith.sitofp %536 : vector<8x8xi32> to vector<8x8xf32>
    %cst_172 = arith.constant dense<0.000000e+00> : vector<8xf32>
    %538 = vector.multi_reduction <add>, %537, %cst_172 [0] : vector<8x8xf32> to vector<8xf32>
    %539 = vector.shape_cast %538 : vector<8xf32> to vector<1x8xf32>
    %cst_173 = arith.constant 2.000000e+00 : f32
    %540 = vector.broadcast %cst_173 : f32 to vector<1x8xf32>
    %541 = arith.addf %539, %540 : vector<1x8xf32>
    %542 = math.log %541 : vector<1x8xf32>
    %543 = arith.divf %509, %542 : vector<1x8xf32>
    %544 = arith.addf %479, %543 : vector<1x8xf32>
    %cst_174 = arith.constant 5.000000e-01 : f32
    %545 = vector.broadcast %cst_174 : f32 to vector<1x8xf32>
    %546 = arith.mulf %545, %518 : vector<1x8xf32>
    %cst_175 = arith.constant 5.500000e+00 : f32
    %547 = vector.broadcast %cst_175 : f32 to vector<1x8xf32>
    %548 = arith.addf %546, %547 : vector<1x8xf32>
    %549 = math.log %548 : vector<1x8xf32>
    %550 = arith.divf %509, %549 : vector<1x8xf32>
    %551 = arith.addf %486, %550 : vector<1x8xf32>
    %cst_176 = arith.constant 2.000000e+00 : f32
    %552 = vector.broadcast %cst_176 : f32 to vector<1x8xf32>
    %553 = arith.addf %527, %552 : vector<1x8xf32>
    %554 = math.log %553 : vector<1x8xf32>
    %555 = arith.divf %509, %554 : vector<1x8xf32>
    %556 = arith.addf %491, %555 : vector<1x8xf32>
    %cst_177 = arith.constant 5.000000e-01 : f32
    %557 = vector.broadcast %cst_177 : f32 to vector<1x8xf32>
    %558 = arith.mulf %557, %521 : vector<1x8xf32>
    %cst_178 = arith.constant 5.500000e+00 : f32
    %559 = vector.broadcast %cst_178 : f32 to vector<1x8xf32>
    %560 = arith.addf %558, %559 : vector<1x8xf32>
    %561 = math.log %560 : vector<1x8xf32>
    %562 = arith.divf %509, %561 : vector<1x8xf32>
    %563 = arith.addf %498, %562 : vector<1x8xf32>
    %cst_179 = arith.constant 2.000000e+00 : f32
    %564 = vector.broadcast %cst_179 : f32 to vector<1x8xf32>
    %565 = arith.addf %533, %564 : vector<1x8xf32>
    %566 = math.log %565 : vector<1x8xf32>
    %567 = arith.divf %509, %566 : vector<1x8xf32>
    %568 = arith.addf %503, %567 : vector<1x8xf32>
    %c7_i32 = arith.constant 7 : i32
    %569 = arith.index_cast %c7_i32 : i32 to index
    %c0_180 = arith.constant 0 : index
    %570 = vector.load %arg6[%569, %c0_180] : memref<8x8xf32, #tpu.memory_space<vmem>>, vector<1x8xf32>
    %571 = arith.index_cast %c7_i32 : i32 to index
    %c0_181 = arith.constant 0 : index
    %572 = vector.load %arg7[%571, %c0_181] : memref<8x8xf32, #tpu.memory_space<vmem>>, vector<1x8xf32>
    %573 = arith.index_cast %c7_i32 : i32 to index
    %c0_182 = arith.constant 0 : index
    %574 = vector.load %arg8[%573, %c0_182] : memref<8x8xf32, #tpu.memory_space<vmem>>, vector<1x8xf32>
    %575 = vector.broadcast %570 : vector<1x8xf32> to vector<8x8xf32>
    %576 = arith.subf %107, %575 : vector<8x8xf32>
    %577 = vector.broadcast %572 : vector<1x8xf32> to vector<8x8xf32>
    %578 = arith.subf %109, %577 : vector<8x8xf32>
    %579 = vector.broadcast %574 : vector<1x8xf32> to vector<8x8xf32>
    %580 = arith.subf %105, %579 : vector<8x8xf32>
    %581 = math.tanh %576 : vector<8x8xf32>
    %cst_183 = arith.constant dense<0.000000e+00> : vector<8xf32>
    %582 = vector.multi_reduction <add>, %581, %cst_183 [0] : vector<8x8xf32> to vector<8xf32>
    %583 = vector.shape_cast %582 : vector<8xf32> to vector<1x8xf32>
    %584 = math.tanh %578 : vector<8x8xf32>
    %cst_184 = arith.constant dense<0.000000e+00> : vector<8xf32>
    %585 = vector.multi_reduction <add>, %584, %cst_184 [0] : vector<8x8xf32> to vector<8xf32>
    %586 = vector.shape_cast %585 : vector<8xf32> to vector<1x8xf32>
    %cst_185 = arith.constant 0.000000e+00 : f32
    %587 = vector.broadcast %cst_185 : f32 to vector<8x8xf32>
    %588 = arith.cmpf ogt, %576, %587 : vector<8x8xf32>
    %589 = arith.extui %588 : vector<8x8xi1> to vector<8x8xi32>
    %590 = arith.sitofp %589 : vector<8x8xi32> to vector<8x8xf32>
    %cst_186 = arith.constant dense<0.000000e+00> : vector<8xf32>
    %591 = vector.multi_reduction <add>, %590, %cst_186 [0] : vector<8x8xf32> to vector<8xf32>
    %592 = vector.shape_cast %591 : vector<8xf32> to vector<1x8xf32>
    %cst_187 = arith.constant 0.000000e+00 : f32
    %593 = vector.broadcast %cst_187 : f32 to vector<8x8xf32>
    %594 = arith.cmpf ogt, %578, %593 : vector<8x8xf32>
    %595 = arith.extui %594 : vector<8x8xi1> to vector<8x8xi32>
    %596 = arith.sitofp %595 : vector<8x8xi32> to vector<8x8xf32>
    %cst_188 = arith.constant dense<0.000000e+00> : vector<8xf32>
    %597 = vector.multi_reduction <add>, %596, %cst_188 [0] : vector<8x8xf32> to vector<8xf32>
    %598 = vector.shape_cast %597 : vector<8xf32> to vector<1x8xf32>
    %cst_189 = arith.constant 0.000000e+00 : f32
    %599 = vector.broadcast %cst_189 : f32 to vector<8x8xf32>
    %600 = arith.cmpf ogt, %580, %599 : vector<8x8xf32>
    %601 = arith.extui %600 : vector<8x8xi1> to vector<8x8xi32>
    %602 = arith.sitofp %601 : vector<8x8xi32> to vector<8x8xf32>
    %cst_190 = arith.constant dense<0.000000e+00> : vector<8xf32>
    %603 = vector.multi_reduction <add>, %602, %cst_190 [0] : vector<8x8xf32> to vector<8xf32>
    %604 = vector.shape_cast %603 : vector<8xf32> to vector<1x8xf32>
    %cst_191 = arith.constant 2.000000e+00 : f32
    %605 = vector.broadcast %cst_191 : f32 to vector<1x8xf32>
    %606 = arith.addf %604, %605 : vector<1x8xf32>
    %607 = math.log %606 : vector<1x8xf32>
    %608 = arith.divf %574, %607 : vector<1x8xf32>
    %609 = arith.addf %544, %608 : vector<1x8xf32>
    %cst_192 = arith.constant 5.000000e-01 : f32
    %610 = vector.broadcast %cst_192 : f32 to vector<1x8xf32>
    %611 = arith.mulf %610, %583 : vector<1x8xf32>
    %cst_193 = arith.constant 5.500000e+00 : f32
    %612 = vector.broadcast %cst_193 : f32 to vector<1x8xf32>
    %613 = arith.addf %611, %612 : vector<1x8xf32>
    %614 = math.log %613 : vector<1x8xf32>
    %615 = arith.divf %574, %614 : vector<1x8xf32>
    %616 = arith.addf %551, %615 : vector<1x8xf32>
    %cst_194 = arith.constant 2.000000e+00 : f32
    %617 = vector.broadcast %cst_194 : f32 to vector<1x8xf32>
    %618 = arith.addf %592, %617 : vector<1x8xf32>
    %619 = math.log %618 : vector<1x8xf32>
    %620 = arith.divf %574, %619 : vector<1x8xf32>
    %621 = arith.addf %556, %620 : vector<1x8xf32>
    %cst_195 = arith.constant 5.000000e-01 : f32
    %622 = vector.broadcast %cst_195 : f32 to vector<1x8xf32>
    %623 = arith.mulf %622, %586 : vector<1x8xf32>
    %cst_196 = arith.constant 5.500000e+00 : f32
    %624 = vector.broadcast %cst_196 : f32 to vector<1x8xf32>
    %625 = arith.addf %623, %624 : vector<1x8xf32>
    %626 = math.log %625 : vector<1x8xf32>
    %627 = arith.divf %574, %626 : vector<1x8xf32>
    %628 = arith.addf %563, %627 : vector<1x8xf32>
    %cst_197 = arith.constant 2.000000e+00 : f32
    %629 = vector.broadcast %cst_197 : f32 to vector<1x8xf32>
    %630 = arith.addf %598, %629 : vector<1x8xf32>
    %631 = math.log %630 : vector<1x8xf32>
    %632 = arith.divf %574, %631 : vector<1x8xf32>
    %633 = arith.addf %568, %632 : vector<1x8xf32>
    %c8_i32_198 = arith.constant 8 : i32
    %cst_199 = arith.constant 1.000000e+00 : f32
    %634 = vector.broadcast %cst_199 : f32 to vector<1x8xf32>
    %635 = arith.divf %634, %609 : vector<1x8xf32>
    %636 = arith.mulf %616, %635 : vector<1x8xf32>
    %637 = arith.mulf %621, %635 : vector<1x8xf32>
    %638 = arith.mulf %628, %635 : vector<1x8xf32>
    %639 = arith.mulf %633, %635 : vector<1x8xf32>
    %640 = tpu.iota {dimensions = array<i32: 1>} : vector<1x8xi32>
    %cst_200 = arith.constant 0.000000e+00 : f32
    %641 = vector.broadcast %cst_200 : f32 to vector<1x8xf32>
    %c0_i32_201 = arith.constant 0 : i32
    %642 = vector.broadcast %c0_i32_201 : i32 to vector<1x8xi32>
    %643 = arith.cmpi eq, %640, %642 : vector<1x8xi32>
    %cst_202 = arith.constant dense<0.000000e+00> : vector<1xf32>
    %644 = vector.multi_reduction <add>, %28, %cst_202 [1] : vector<1x8xf32> to vector<1xf32>
    %645 = vector.shape_cast %644 : vector<1xf32> to vector<1x1xf32>
    %cst_203 = arith.constant 0.000000e+00 : f32
    %646 = vector.shape_cast %645 : vector<1x1xf32> to vector<1x1xf32>
    %647 = vector.broadcast %646 : vector<1x1xf32> to vector<1x8xf32>
    %648 = vector.broadcast %cst_203 : f32 to vector<1x8xf32>
    %649 = arith.select %643, %647, %648 : vector<1x8xi1>, vector<1x8xf32>
    %650 = arith.addf %641, %649 : vector<1x8xf32>
    %c1_i32_204 = arith.constant 1 : i32
    %651 = vector.broadcast %c1_i32_204 : i32 to vector<1x8xi32>
    %652 = arith.cmpi eq, %640, %651 : vector<1x8xi32>
    %cst_205 = arith.constant dense<0.000000e+00> : vector<1xf32>
    %653 = vector.multi_reduction <add>, %38, %cst_205 [1] : vector<1x8xf32> to vector<1xf32>
    %654 = vector.shape_cast %653 : vector<1xf32> to vector<1x1xf32>
    %cst_206 = arith.constant 0.000000e+00 : f32
    %655 = vector.shape_cast %654 : vector<1x1xf32> to vector<1x1xf32>
    %656 = vector.broadcast %655 : vector<1x1xf32> to vector<1x8xf32>
    %657 = vector.broadcast %cst_206 : f32 to vector<1x8xf32>
    %658 = arith.select %652, %656, %657 : vector<1x8xi1>, vector<1x8xf32>
    %659 = arith.addf %650, %658 : vector<1x8xf32>
    %c2_i32_207 = arith.constant 2 : i32
    %660 = vector.broadcast %c2_i32_207 : i32 to vector<1x8xi32>
    %661 = arith.cmpi eq, %640, %660 : vector<1x8xi32>
    %cst_208 = arith.constant dense<0.000000e+00> : vector<1xf32>
    %662 = vector.multi_reduction <add>, %636, %cst_208 [1] : vector<1x8xf32> to vector<1xf32>
    %663 = vector.shape_cast %662 : vector<1xf32> to vector<1x1xf32>
    %cst_209 = arith.constant 0.000000e+00 : f32
    %664 = vector.shape_cast %663 : vector<1x1xf32> to vector<1x1xf32>
    %665 = vector.broadcast %664 : vector<1x1xf32> to vector<1x8xf32>
    %666 = vector.broadcast %cst_209 : f32 to vector<1x8xf32>
    %667 = arith.select %661, %665, %666 : vector<1x8xi1>, vector<1x8xf32>
    %668 = arith.addf %659, %667 : vector<1x8xf32>
    %c3_i32_210 = arith.constant 3 : i32
    %669 = vector.broadcast %c3_i32_210 : i32 to vector<1x8xi32>
    %670 = arith.cmpi eq, %640, %669 : vector<1x8xi32>
    %cst_211 = arith.constant dense<0.000000e+00> : vector<1xf32>
    %671 = vector.multi_reduction <add>, %637, %cst_211 [1] : vector<1x8xf32> to vector<1xf32>
    %672 = vector.shape_cast %671 : vector<1xf32> to vector<1x1xf32>
    %cst_212 = arith.constant 0.000000e+00 : f32
    %673 = vector.shape_cast %672 : vector<1x1xf32> to vector<1x1xf32>
    %674 = vector.broadcast %673 : vector<1x1xf32> to vector<1x8xf32>
    %675 = vector.broadcast %cst_212 : f32 to vector<1x8xf32>
    %676 = arith.select %670, %674, %675 : vector<1x8xi1>, vector<1x8xf32>
    %677 = arith.addf %668, %676 : vector<1x8xf32>
    %c4_i32_213 = arith.constant 4 : i32
    %678 = vector.broadcast %c4_i32_213 : i32 to vector<1x8xi32>
    %679 = arith.cmpi eq, %640, %678 : vector<1x8xi32>
    %cst_214 = arith.constant dense<0.000000e+00> : vector<1xf32>
    %680 = vector.multi_reduction <add>, %638, %cst_214 [1] : vector<1x8xf32> to vector<1xf32>
    %681 = vector.shape_cast %680 : vector<1xf32> to vector<1x1xf32>
    %cst_215 = arith.constant 0.000000e+00 : f32
    %682 = vector.shape_cast %681 : vector<1x1xf32> to vector<1x1xf32>
    %683 = vector.broadcast %682 : vector<1x1xf32> to vector<1x8xf32>
    %684 = vector.broadcast %cst_215 : f32 to vector<1x8xf32>
    %685 = arith.select %679, %683, %684 : vector<1x8xi1>, vector<1x8xf32>
    %686 = arith.addf %677, %685 : vector<1x8xf32>
    %c5_i32_216 = arith.constant 5 : i32
    %687 = vector.broadcast %c5_i32_216 : i32 to vector<1x8xi32>
    %688 = arith.cmpi eq, %640, %687 : vector<1x8xi32>
    %cst_217 = arith.constant dense<0.000000e+00> : vector<1xf32>
    %689 = vector.multi_reduction <add>, %639, %cst_217 [1] : vector<1x8xf32> to vector<1xf32>
    %690 = vector.shape_cast %689 : vector<1xf32> to vector<1x1xf32>
    %cst_218 = arith.constant 0.000000e+00 : f32
    %691 = vector.shape_cast %690 : vector<1x1xf32> to vector<1x1xf32>
    %692 = vector.broadcast %691 : vector<1x1xf32> to vector<1x8xf32>
    %693 = vector.broadcast %cst_218 : f32 to vector<1x8xf32>
    %694 = arith.select %688, %692, %693 : vector<1x8xi1>, vector<1x8xf32>
    %695 = arith.addf %686, %694 : vector<1x8xf32>
    %696 = vector.shape_cast %695 : vector<1x8xf32> to vector<1x1x8xf32>
    %c0_219 = arith.constant 0 : index
    %c0_220 = arith.constant 0 : index
    %c0_221 = arith.constant 0 : index
    %697 = vector.load %arg5[%c0_219, %c0_220, %c0_221] : memref<1x1x8xf32, #tpu.memory_space<vmem>>, vector<1x1x8xf32>
    tpu.vector_store %arg5[%c0_219, %c0_220, %c0_221], %696 {strides = array<i32>} : memref<1x1x8xf32, #tpu.memory_space<vmem>>, vector<1x1x8xf32>,
    return
  }
  func.func @transform_0(%arg0: i32) -> (i32, i32) {
    %c0_i32 = arith.constant 0 : i32
    %c0_i32_0 = arith.constant 0 : i32
    %c0_i32_1 = arith.constant 0 : i32
    return %c0_i32, %c0_i32_0 : i32, i32
  }
  func.func @transform_1(%arg0: i32) -> (i32, i32) {
    %c0_i32 = arith.constant 0 : i32
    %c0_i32_0 = arith.constant 0 : i32
    %c0_i32_1 = arith.constant 0 : i32
    return %c0_i32, %c0_i32_0 : i32, i32
  }
  func.func @transform_2(%arg0: i32) -> (i32, i32, i32) {
    %c0_i32 = arith.constant 0 : i32
    %c0_i32_0 = arith.constant 0 : i32
    %c0_i32_1 = arith.constant 0 : i32
    return %c0_i32, %arg0, %c0_i32_0 : i32, i32, i32
  }
  func.func @transform_3(%arg0: i32) -> (i32, i32) {
    %c0_i32 = arith.constant 0 : i32
    %c0_i32_0 = arith.constant 0 : i32
    %c0_i32_1 = arith.constant 0 : i32
    return %c0_i32, %c0_i32_0 : i32, i32
  }
  func.func @transform_4(%arg0: i32) -> (i32, i32, i32) {
    %c0_i32 = arith.constant 0 : i32
    %c0_i32_0 = arith.constant 0 : i32
    %c0_i32_1 = arith.constant 0 : i32
    return %arg0, %c0_i32, %c0_i32_0 : i32, i32, i32
  }
}

</mosaic_0001>

<llo_original>
// kernel: tpu_custom_call.1
$region0: #{tpu_custom_call.1}
  #allocation0 [shape = 'u32[]', space=smem, size = 0x4, offset = 0x4, fixed_abs, tag = 'smem constant byte address 0x4 - core index']
  #allocation1 [shape = 'u32[72,128]{1,0:T(1,128)}', space=vmem, size = 0x9000, scoped, tag = 'internal scratch']
  #allocation2 [shape = 'f32[8,8]{1,0:T(8,128)}', space=vmem, size = 0x1000, scoped, tag = 'scratch operand']
  #allocation3 [shape = 'f32[8,8]{1,0:T(8,128)}', space=vmem, size = 0x1000, scoped, tag = 'scratch operand']
  #allocation4 [shape = 'f32[8,8]{1,0:T(8,128)}', space=vmem, size = 0x1000, scoped, tag = 'scratch operand']
  %s0 = inlined_call_operand.hbm [shape: f32[8,32], index: 0, kind: input, shape index: {}]
  %s1 = inlined_call_operand.hbm [shape: f32[8,32], index: 1, kind: input, shape index: {}]
  %s2 = inlined_call_operand.hbm [shape: f32[5,8,16], index: 2, kind: input, shape index: {}]
  %s3 = inlined_call_operand.hbm [shape: f32[8,16], index: 3, kind: input, shape index: {}]
  %s4 = inlined_call_operand.hbm [shape: f32[1,1,8], index: 4, kind: output, shape index: {}]
  %s5 = sld [smem:[#allocation0]]
  $region42: #{tpu_custom_call.1} parent=0
    _
  %s7 = ssub.s32 1, %s5
  %s8 = scalar_select 0, %s7, %s5
  $region1: #{tpu_custom_call.1} parent=0
    #allocation5 [shape = 'u8[4096]{0}', space=vmem, size = 0x1000, scoped, tag = 'input window, operand 0, single buffered']
    #allocation6 [shape = 's32[1]{0}', space=sflag, size = 0x4, scoped, tag = 'scoped memory for tpu_custom_call.1']
    #allocation7 [shape = 's32[1]{0}', space=sflag, size = 0x4, scoped, tag = 'scoped memory for tpu_custom_call.1']
    #allocation8 [shape = 'u8[4096]{0}', space=vmem, size = 0x1000, scoped, tag = 'input window, operand 1, single buffered']
    #allocation9 [shape = 's32[1]{0}', space=sflag, size = 0x4, scoped, tag = 'scoped memory for tpu_custom_call.1']
    #allocation10 [shape = 'u8[20480]{0}', space=vmem, size = 0x5000, scoped, tag = 'input window, operand 2, single buffered']
    #allocation11 [shape = 'u8[4096]{0}', space=vmem, size = 0x1000, scoped, tag = 'input window, operand 3, single buffered']
    #allocation12 [shape = 's32[1]{0}', space=sflag, size = 0x4, scoped, tag = 'scoped memory for tpu_custom_call.1']
    #allocation13 [shape = 'u8[512]{0}', space=vmem, size = 0x400, scoped, tag = 'output window, operand 0, single buffered']
    %9 = vsyncpa [#allocation6], 0
    %10 = vsyncpa [#allocation9], 0
    %11 = vsyncpa [#allocation12], 0
    %12 = vsyncpa [#allocation7], 0
    // Predicated region
    $region2: #{tpu_custom_call.1} parent=1 // pred_check
      _
    $region3: #{tpu_custom_call.1} parent=1 // pred_check_branch
      %14 = sbr.rel (0) target = $region5
    $region4: #{tpu_custom_call.1} parent=1 // pred_region
      %16 = vsyncadd [#allocation6], 0
      %s18 = sshll.u32 %s0, 4
      %s19 = int_to_ptr.hbm [resolvable:$true] %s18
      %s20 = sshll.u32 [#allocation5], 4
      %s21 = int_to_ptr.vmem [resolvable:$true] %s20
      %23 = dma.hbm_to_vmem [thread:$0]  %s19, 128, %s21, [#allocation6]
    $region5: #{tpu_custom_call.1} parent=1 // pred_fallthru
      _
    // Predicated region
    $region6: #{tpu_custom_call.1} parent=1 // pred_check
      _
    $region7: #{tpu_custom_call.1} parent=1 // pred_check_branch
      %25 = sbr.rel (0) target = $region9
    $region8: #{tpu_custom_call.1} parent=1 // pred_region
      %27 = vsyncadd [#allocation9], 0
      %s29 = sshll.u32 %s1, 4
      %s30 = int_to_ptr.hbm [resolvable:$true] %s29
      %s31 = sshll.u32 [#allocation8], 4
      %s32 = int_to_ptr.vmem [resolvable:$true] %s31
      %34 = dma.hbm_to_vmem [thread:$0]  %s30, 128, %s32, [#allocation9]
    $region9: #{tpu_custom_call.1} parent=1 // pred_fallthru
      _
    // Predicated region
    $region10: #{tpu_custom_call.1} parent=1 // pred_check
      _
    $region11: #{tpu_custom_call.1} parent=1 // pred_check_branch
      %36 = sbr.rel (0) target = $region13
    $region12: #{tpu_custom_call.1} parent=1 // pred_region
      %38 = vsyncadd [#allocation9], 0
      %s39 = sshll.u32 %s2, 4
      %s40 = int_to_ptr.hbm [resolvable:$true] %s39
      %s41 = sshll.u32 [#allocation10], 4
      %s42 = int_to_ptr.vmem [resolvable:$true] %s41
      %47 = dma.hbm_to_vmem [thread:$0]  %s40, 640, %s42, [#allocation9], 128, 128, 8
    $region13: #{tpu_custom_call.1} parent=1 // pred_fallthru
      _
    // Predicated region
    $region14: #{tpu_custom_call.1} parent=1 // pred_check
      _
    $region15: #{tpu_custom_call.1} parent=1 // pred_check_branch
      %49 = sbr.rel (0) target = $region17
    $region16: #{tpu_custom_call.1} parent=1 // pred_region
      %51 = vsyncadd [#allocation12], 0
      %s53 = sshll.u32 %s3, 4
      %s54 = int_to_ptr.hbm [resolvable:$true] %s53
      %s55 = sshll.u32 [#allocation11], 4
      %s56 = int_to_ptr.vmem [resolvable:$true] %s55
      %58 = dma.hbm_to_vmem [thread:$0]  %s54, 128, %s56, [#allocation12]
    $region17: #{tpu_custom_call.1} parent=1 // pred_fallthru
      _
    // Predicated region
    $region18: #{tpu_custom_call.1} parent=1 // pred_check
      _
    $region19: #{tpu_custom_call.1} parent=1 // pred_check_branch
      %60 = sbr.rel (0) target = $region21
    $region20: #{tpu_custom_call.1} parent=1 // pred_region
      %62 = dma.done [#allocation6], 128
    $region21: #{tpu_custom_call.1} parent=1 // pred_fallthru
      _
    // Predicated region
    $region22: #{tpu_custom_call.1} parent=1 // pred_check
      _
    $region23: #{tpu_custom_call.1} parent=1 // pred_check_branch
      %64 = sbr.rel (0) target = $region25
    $region24: #{tpu_custom_call.1} parent=1 // pred_region
      %66 = dma.done [#allocation9], 128
    $region25: #{tpu_custom_call.1} parent=1 // pred_fallthru
      _
    // Predicated region
    $region26: #{tpu_custom_call.1} parent=1 // pred_check
      _
    $region27: #{tpu_custom_call.1} parent=1 // pred_check_branch
      %68 = sbr.rel (0) target = $region29
    $region28: #{tpu_custom_call.1} parent=1 // pred_region
      %70 = dma.done [#allocation9], 640
    $region29: #{tpu_custom_call.1} parent=1 // pred_fallthru
      _
    // Predicated region
    $region30: #{tpu_custom_call.1} parent=1 // pred_check
      _
    $region31: #{tpu_custom_call.1} parent=1 // pred_check_branch
      %72 = sbr.rel (0) target = $region33
    $region32: #{tpu_custom_call.1} parent=1 // pred_region
      %74 = dma.done [#allocation12], 128
    $region33: #{tpu_custom_call.1} parent=1 // pred_fallthru
      _
    %s75 = smul.u32 0, 8
    %v76 = vld [vmem:[#allocation5] sm:$0xff]
    %v77 = vld [vmem:[#allocation8] sm:$0xff]
    %s78 = scalar_lea.vmem [#allocation5], %s75
    %v79 = vld [vmem:[%s78] sm:$0xff]
    %s80 = scalar_lea.vmem [#allocation8], %s75
    %v81 = vld [vmem:[%s80] sm:$0xff]
    %vm82 = vcmask 261120
    %v84 = vsel %vm82, %v77, 0
    %v87 = vsel %vm82, %v79, 0
    %89 = vmatpush.xpose.msra.mxu0 0.0
    %90 = vmatpush.xpose.msra.mxu0 0.0
    %91 = vmatpush.xpose.msra.mxu0 0.0
    %92 = vmatpush.xpose.msra.mxu0 0.0
    %93 = vmatpush.xpose.msra.mxu0 0.0
    %94 = vmatpush.xpose.msra.mxu0 0.0
    %95 = vmatpush.xpose.msra.mxu0 0.0
    %96 = vmatpush.xpose.msra.mxu0 0.0
    %97 = vmatpush.xpose.msra.mxu0 0.0
    %98 = vmatpush.xpose.msra.mxu0 0.0
    %99 = vmatpush.xpose.msra.mxu0 0.0
    %100 = vmatpush.xpose.msra.mxu0 0.0
    %101 = vmatpush.xpose.msra.mxu0 0.0
    %102 = vmatpush.xpose.msra.mxu0 0.0
    %103 = vmatpush.xpose.msra.mxu0 0.0
    %104 = vmatpush.xpose.msra.mxu0 %v87
    %105 = vmatmul.f32.gmra.mxu0 %v84
    %v106 = vpop.f32.mrf.mxu0
    %v107 = vadd.f32 0.0, %v106
    %108 = vdwg.mxu0
    %v110 = vsel %vm82, %v76, 0
    %v113 = vsel %vm82, %v81, 0
    %115 = vmatpush.xpose.msra.mxu0 0.0
    %116 = vmatpush.xpose.msra.mxu0 0.0
    %117 = vmatpush.xpose.msra.mxu0 0.0
    %118 = vmatpush.xpose.msra.mxu0 0.0
    %119 = vmatpush.xpose.msra.mxu0 0.0
    %120 = vmatpush.xpose.msra.mxu0 0.0
    %121 = vmatpush.xpose.msra.mxu0 0.0
    %122 = vmatpush.xpose.msra.mxu0 0.0
    %123 = vmatpush.xpose.msra.mxu0 0.0
    %124 = vmatpush.xpose.msra.mxu0 0.0
    %125 = vmatpush.xpose.msra.mxu0 0.0
    %126 = vmatpush.xpose.msra.mxu0 0.0
    %127 = vmatpush.xpose.msra.mxu0 0.0
    %128 = vmatpush.xpose.msra.mxu0 0.0
    %129 = vmatpush.xpose.msra.mxu0 0.0
    %130 = vmatpush.xpose.msra.mxu0 %v113
    %131 = vmatmul.f32.gmra.mxu0 %v110
    %v132 = vpop.f32.mrf.mxu0
    %v133 = vadd.f32 0.0, %v132
    %134 = vdwg.mxu0
    %v135 = vlaneseq
    %v136 = vshrl.u32 %v135, 7
    %v137 = vlaneseq
    %v138 = vand.u32 %v137, 127
    %v139 = vstv %s75
    %v140 = vadd.s32 %v138, %v139
    %vm141 = vcmp.eq.s32.totalorder %v136, %v140
    %v142 = vsel %vm141, %v107, 0.0
    %vm143 = vcmask 64512
    %v144 = vsel %vm143, %v142, 0.0
    %v145 = vrot.slane %v144, 4
    %v146 = vadd.f32 %v144, %v145
    %v147 = vrot.slane %v146, 2
    %v148 = vadd.f32 %v146, %v147
    %v149 = vrot.slane %v148, 1
    %v150 = vadd.f32 %v148, %v149
    %v151 = vsub.f32 %v107, %v150
    %v152 = vadd.f32 %v151, 0.2
    %v153 = vmax.f32 %v152, 0.0
    %v154 = vsel %vm141, 0.0, %v153
    %v155 = vsel %vm143, %v154, -inf
    %v156 = vrot.slane %v155, 4
    %v157 = vmax.f32 %v155, %v156
    %v158 = vrot.slane %v157, 2
    %v159 = vmax.f32 %v157, %v158
    %v160 = vrot.slane %v159, 1
    %v161 = vmax.f32 %v159, %v160
    %v162 = vsub.f32 %v133, %v150
    %v163 = vadd.f32 %v162, 0.2
    %v164 = vmax.f32 %v163, 0.0
    %v165 = vsel %vm141, 0.0, %v164
    %v166 = vsel %vm143, %v165, -inf
    %v167 = vrot.slane %v166, 4
    %v168 = vmax.f32 %v166, %v167
    %v169 = vrot.slane %v168, 2
    %v170 = vmax.f32 %v168, %v169
    %v171 = vrot.slane %v170, 1
    %v172 = vmax.f32 %v170, %v171
    %v173 = vld [vmem:[#allocation11] sm:$0xff]
    %v174 = vmul.f32 %v173, %v173
    %vm175 = vcmask 130048
    %v176 = vsel %vm175, %v174, 0.0
    %177 = vadd.xlane.f32.xlu0 %v176
    %v178 = vpop.xlane.xlu0 %177
    %v179 = vrsqrt.pop %v178
    %v180 = vmul.f32 %v179, %v178
    %v181 = vmul.f32 %v180, %v179
    %v182 = vmul.f32 0.5, %v181
    %v183 = vsub.f32 1.5, %v182
    %v184 = vmul.f32 %v179, %v183
    %vm185 = vweird.f32 %v178
    %vm186 = vweird.f32 %v179
    %vm187 = vmor %vm185, %vm186
    %v188 = vsel %vm187, %v179, %v184
    %v189 = vmul.f32 %v173, %v188
    %v190 = vld [vmem:[#allocation10] sm:$0xff]
    %v191 = vmul.f32 %v190, %v190
    %v192 = vsel %vm175, %v191, 0.0
    %193 = vadd.xlane.f32.xlu0 %v192
    %v194 = vpop.xlane.xlu0 %193
    %v195 = vrsqrt.pop %v194
    %v196 = vmul.f32 %v195, %v194
    %v197 = vmul.f32 %v196, %v195
    %v198 = vmul.f32 0.5, %v197
    %v199 = vsub.f32 1.5, %v198
    %v200 = vmul.f32 %v195, %v199
    %vm201 = vweird.f32 %v194
    %vm202 = vweird.f32 %v195
    %vm203 = vmor %vm201, %vm202
    %v204 = vsel %vm203, %v195, %v200
    %v205 = vmul.f32 %v190, %v204
    %v207 = vsel %vm175, %v189, 0
    %v210 = vsel %vm175, %v205, 0
    %212 = vmatpush.xpose.msra.mxu0 0.0
    %213 = vmatpush.xpose.msra.mxu0 0.0
    %214 = vmatpush.xpose.msra.mxu0 0.0
    %215 = vmatpush.xpose.msra.mxu0 0.0
    %216 = vmatpush.xpose.msra.mxu0 0.0
    %217 = vmatpush.xpose.msra.mxu0 0.0
    %218 = vmatpush.xpose.msra.mxu0 0.0
    %219 = vmatpush.xpose.msra.mxu0 0.0
    %220 = vmatpush.xpose.msra.mxu0 0.0
    %221 = vmatpush.xpose.msra.mxu0 0.0
    %222 = vmatpush.xpose.msra.mxu0 0.0
    %223 = vmatpush.xpose.msra.mxu0 0.0
    %224 = vmatpush.xpose.msra.mxu0 0.0
    %225 = vmatpush.xpose.msra.mxu0 0.0
    %226 = vmatpush.xpose.msra.mxu0 0.0
    %227 = vmatpush.xpose.msra.mxu0 %v210
    %228 = vmatmul.f32.gmra.mxu0 %v207
    %v229 = vpop.f32.mrf.mxu0
    %v230 = vadd.f32 0.0, %v229
    %231 = vdwg.mxu0
    %s232 = scalar_lea.vmem [#allocation10], 8
    %v233 = vld [vmem:[%s232] sm:$0xff]
    %v234 = vmul.f32 %v233, %v233
    %v235 = vsel %vm175, %v234, 0.0
    %236 = vadd.xlane.f32.xlu0 %v235
    %v237 = vpop.xlane.xlu0 %236
    %v238 = vrsqrt.pop %v237
    %v239 = vmul.f32 %v238, %v237
    %v240 = vmul.f32 %v239, %v238
    %v241 = vmul.f32 0.5, %v240
    %v242 = vsub.f32 1.5, %v241
    %v243 = vmul.f32 %v238, %v242
    %vm244 = vweird.f32 %v237
    %vm245 = vweird.f32 %v238
    %vm246 = vmor %vm244, %vm245
    %v247 = vsel %vm246, %v238, %v243
    %v248 = vmul.f32 %v233, %v247
    %v250 = vsel %vm175, %v248, 0
    %252 = vmatpush.xpose.msra.mxu0 0.0
    %253 = vmatpush.xpose.msra.mxu0 0.0
    %254 = vmatpush.xpose.msra.mxu0 0.0
    %255 = vmatpush.xpose.msra.mxu0 0.0
    %256 = vmatpush.xpose.msra.mxu0 0.0
    %257 = vmatpush.xpose.msra.mxu0 0.0
    %258 = vmatpush.xpose.msra.mxu0 0.0
    %259 = vmatpush.xpose.msra.mxu0 0.0
    %260 = vmatpush.xpose.msra.mxu0 0.0
    %261 = vmatpush.xpose.msra.mxu0 0.0
    %262 = vmatpush.xpose.msra.mxu0 0.0
    %263 = vmatpush.xpose.msra.mxu0 0.0
    %264 = vmatpush.xpose.msra.mxu0 0.0
    %265 = vmatpush.xpose.msra.mxu0 0.0
    %266 = vmatpush.xpose.msra.mxu0 0.0
    %267 = vmatpush.xpose.msra.mxu0 %v250
    %268 = vmatmul.f32.gmra.mxu0 %v207
    %v269 = vpop.f32.mrf.mxu0
    %v270 = vadd.f32 0.0, %v269
    %271 = vdwg.mxu0
    %v272 = vmax.f32 %v230, %v270
    %s273 = scalar_lea.vmem [#allocation10], 16
    %v274 = vld [vmem:[%s273] sm:$0xff]
    %v275 = vmul.f32 %v274, %v274
    %v276 = vsel %vm175, %v275, 0.0
    %277 = vadd.xlane.f32.xlu0 %v276
    %v278 = vpop.xlane.xlu0 %277
    %v279 = vrsqrt.pop %v278
    %v280 = vmul.f32 %v279, %v278
    %v281 = vmul.f32 %v280, %v279
    %v282 = vmul.f32 0.5, %v281
    %v283 = vsub.f32 1.5, %v282
    %v284 = vmul.f32 %v279, %v283
    %vm285 = vweird.f32 %v278
    %vm286 = vweird.f32 %v279
    %vm287 = vmor %vm285, %vm286
    %v288 = vsel %vm287, %v279, %v284
    %v289 = vmul.f32 %v274, %v288
    %v291 = vsel %vm175, %v289, 0
    %293 = vmatpush.xpose.msra.mxu0 0.0
    %294 = vmatpush.xpose.msra.mxu0 0.0
    %295 = vmatpush.xpose.msra.mxu0 0.0
    %296 = vmatpush.xpose.msra.mxu0 0.0
    %297 = vmatpush.xpose.msra.mxu0 0.0
    %298 = vmatpush.xpose.msra.mxu0 0.0
    %299 = vmatpush.xpose.msra.mxu0 0.0
    %300 = vmatpush.xpose.msra.mxu0 0.0
    %301 = vmatpush.xpose.msra.mxu0 0.0
    %302 = vmatpush.xpose.msra.mxu0 0.0
    %303 = vmatpush.xpose.msra.mxu0 0.0
    %304 = vmatpush.xpose.msra.mxu0 0.0
    %305 = vmatpush.xpose.msra.mxu0 0.0
    %306 = vmatpush.xpose.msra.mxu0 0.0
    %307 = vmatpush.xpose.msra.mxu0 0.0
    %308 = vmatpush.xpose.msra.mxu0 %v291
    %309 = vmatmul.f32.gmra.mxu0 %v207
    %v310 = vpop.f32.mrf.mxu0
    %v311 = vadd.f32 0.0, %v310
    %312 = vdwg.mxu0
    %v313 = vmax.f32 %v272, %v311
    %s314 = scalar_lea.vmem [#allocation10], 24
    %v315 = vld [vmem:[%s314] sm:$0xff]
    %v316 = vmul.f32 %v315, %v315
    %v317 = vsel %vm175, %v316, 0.0
    %318 = vadd.xlane.f32.xlu0 %v317
    %v319 = vpop.xlane.xlu0 %318
    %v320 = vrsqrt.pop %v319
    %v321 = vmul.f32 %v320, %v319
    %v322 = vmul.f32 %v321, %v320
    %v323 = vmul.f32 0.5, %v322
    %v324 = vsub.f32 1.5, %v323
    %v325 = vmul.f32 %v320, %v324
    %vm326 = vweird.f32 %v319
    %vm327 = vweird.f32 %v320
    %vm328 = vmor %vm326, %vm327
    %v329 = vsel %vm328, %v320, %v325
    %v330 = vmul.f32 %v315, %v329
    %v332 = vsel %vm175, %v330, 0
    %334 = vmatpush.xpose.msra.mxu0 0.0
    %335 = vmatpush.xpose.msra.mxu0 0.0
    %336 = vmatpush.xpose.msra.mxu0 0.0
    %337 = vmatpush.xpose.msra.mxu0 0.0
    %338 = vmatpush.xpose.msra.mxu0 0.0
    %339 = vmatpush.xpose.msra.mxu0 0.0
    %340 = vmatpush.xpose.msra.mxu0 0.0
    %341 = vmatpush.xpose.msra.mxu0 0.0
    %342 = vmatpush.xpose.msra.mxu0 0.0
    %343 = vmatpush.xpose.msra.mxu0 0.0
    %344 = vmatpush.xpose.msra.mxu0 0.0
    %345 = vmatpush.xpose.msra.mxu0 0.0
    %346 = vmatpush.xpose.msra.mxu0 0.0
    %347 = vmatpush.xpose.msra.mxu0 0.0
    %348 = vmatpush.xpose.msra.mxu0 0.0
    %349 = vmatpush.xpose.msra.mxu0 %v332
    %350 = vmatmul.f32.gmra.mxu0 %v207
    %v351 = vpop.f32.mrf.mxu0
    %v352 = vadd.f32 0.0, %v351
    %353 = vdwg.mxu0
    %v354 = vmax.f32 %v313, %v352
    %s355 = scalar_lea.vmem [#allocation10], 32
    %v356 = vld [vmem:[%s355] sm:$0xff]
    %v357 = vmul.f32 %v356, %v356
    %v358 = vsel %vm175, %v357, 0.0
    %359 = vadd.xlane.f32.xlu0 %v358
    %v360 = vpop.xlane.xlu0 %359
    %v361 = vrsqrt.pop %v360
    %v362 = vmul.f32 %v361, %v360
    %v363 = vmul.f32 %v362, %v361
    %v364 = vmul.f32 0.5, %v363
    %v365 = vsub.f32 1.5, %v364
    %v366 = vmul.f32 %v361, %v365
    %vm367 = vweird.f32 %v360
    %vm368 = vweird.f32 %v361
    %vm369 = vmor %vm367, %vm368
    %v370 = vsel %vm369, %v361, %v366
    %v371 = vmul.f32 %v356, %v370
    %v373 = vsel %vm175, %v371, 0
    %375 = vmatpush.xpose.msra.mxu0 0.0
    %376 = vmatpush.xpose.msra.mxu0 0.0
    %377 = vmatpush.xpose.msra.mxu0 0.0
    %378 = vmatpush.xpose.msra.mxu0 0.0
    %379 = vmatpush.xpose.msra.mxu0 0.0
    %380 = vmatpush.xpose.msra.mxu0 0.0
    %381 = vmatpush.xpose.msra.mxu0 0.0
    %382 = vmatpush.xpose.msra.mxu0 0.0
    %383 = vmatpush.xpose.msra.mxu0 0.0
    %384 = vmatpush.xpose.msra.mxu0 0.0
    %385 = vmatpush.xpose.msra.mxu0 0.0
    %386 = vmatpush.xpose.msra.mxu0 0.0
    %387 = vmatpush.xpose.msra.mxu0 0.0
    %388 = vmatpush.xpose.msra.mxu0 0.0
    %389 = vmatpush.xpose.msra.mxu0 0.0
    %390 = vmatpush.xpose.msra.mxu0 %v373
    %391 = vmatmul.f32.gmra.mxu0 %v207
    %v392 = vpop.f32.mrf.mxu0
    %v393 = vadd.f32 0.0, %v392
    %394 = vdwg.mxu0
    %v395 = vmax.f32 %v354, %v393
    %v396 = vadd.f32 %v395, 1.0
    %v397 = vmul.f32 %v396, 0.5
    %v398 = vsel %vm141, 1.0, %v397
    %v399 = vmul.f32 %v398, 0.6931472
    %v400 = vmul.f32 %v399, 1.442695
    %v401 = vpow.pop %v400
    %v402 = vsub.f32 %v401, 1.0
    %v403 = vmul.f32 %v107, 5.0
    %v404 = vmul.f32 %v133, 5.0
    %405 = vst.msk [vmem:[#allocation2] sm:$0xff] %vm143, %v403
    %406 = vst.msk [vmem:[#allocation3] sm:$0xff] %vm143, %v404
    %407 = vst.msk [vmem:[#allocation4] sm:$0xff] %vm143, %v402
    %v408 = vld [vmem:[#allocation2] sm:$0x1]
    %v409 = vld [vmem:[#allocation3] sm:$0x1]
    %v410 = vld [vmem:[#allocation4] sm:$0x1]
    %v411 = vperm.slane %v408, 0
    %v412 = vsub.f32 %v403, %v411
    %v413 = vperm.slane %v409, 0
    %v414 = vsub.f32 %v404, %v413
    %v415 = vperm.slane %v410, 0
    %v416 = vsub.f32 %v402, %v415
    %v417 = vtanh.pop %v412
    %v418 = vsel %vm143, %v417, 0.0
    %v419 = vrot.slane %v418, 4
    %v420 = vadd.f32 %v418, %v419
    %v421 = vrot.slane %v420, 2
    %v422 = vadd.f32 %v420, %v421
    %v423 = vrot.slane %v422, 1
    %v424 = vadd.f32 %v422, %v423
    %v425 = vtanh.pop %v414
    %v426 = vsel %vm143, %v425, 0.0
    %v427 = vrot.slane %v426, 4
    %v428 = vadd.f32 %v426, %v427
    %v429 = vrot.slane %v428, 2
    %v430 = vadd.f32 %v428, %v429
    %v431 = vrot.slane %v430, 1
    %v432 = vadd.f32 %v430, %v431
    %vm433 = vcmp.gt.f32.partialorder %v412, 0.0
    %v434 = vsel %vm433, 1, 0
    %v435 = vcvt.s32.f32 %v434
    %v436 = vsel %vm143, %v435, 0.0
    %v437 = vrot.slane %v436, 4
    %v438 = vadd.f32 %v436, %v437
    %v439 = vrot.slane %v438, 2
    %v440 = vadd.f32 %v438, %v439
    %v441 = vrot.slane %v440, 1
    %v442 = vadd.f32 %v440, %v441
    %vm443 = vcmp.gt.f32.partialorder %v414, 0.0
    %v444 = vsel %vm443, 1, 0
    %v445 = vcvt.s32.f32 %v444
    %v446 = vsel %vm143, %v445, 0.0
    %v447 = vrot.slane %v446, 4
    %v448 = vadd.f32 %v446, %v447
    %v449 = vrot.slane %v448, 2
    %v450 = vadd.f32 %v448, %v449
    %v451 = vrot.slane %v450, 1
    %v452 = vadd.f32 %v450, %v451
    %vm453 = vcmp.gt.f32.partialorder %v416, 0.0
    %v454 = vsel %vm453, 1, 0
    %v455 = vcvt.s32.f32 %v454
    %v456 = vsel %vm143, %v455, 0.0
    %v457 = vrot.slane %v456, 4
    %v458 = vadd.f32 %v456, %v457
    %v459 = vrot.slane %v458, 2
    %v460 = vadd.f32 %v458, %v459
    %v461 = vrot.slane %v460, 1
    %v462 = vadd.f32 %v460, %v461
    %v463 = vadd.f32 %v462, 2.0
    %v464 = vlog2.pop %v463
    %v465 = vmul.f32 %v464, 0.6931472
    %v466 = vrcp.pop %v465
    %v467 = vmul.f32 %v465, %v466
    %v468 = vsub.f32 1.0, %v467
    %v469 = vmul.f32 %v466, %v468
    %v470 = vadd.f32 %v466, %v469
    %vm471 = vweird.f32 %v465
    %vm472 = vweird.f32 %v466
    %vm473 = vmor %vm471, %vm472
    %v474 = vsel %vm473, %v466, %v470
    %v475 = vand.u32 2147483647, %v465
    %vm476 = vcmp.eq.f32.partialorder %v475, 8.507059e+37
    %v477 = vand.u32 %v465, 2147483648
    %v478 = vor.u32 1.1754944e-38, %v477
    %v479 = vsel %vm476, %v478, %v474
    %v480 = vmul.f32 %v410, %v479
    %v481 = vadd.f32 %v480, 0.0
    %v482 = vmul.f32 %v424, 0.5
    %v483 = vadd.f32 %v482, 5.5
    %v484 = vlog2.pop %v483
    %v485 = vmul.f32 %v484, 0.6931472
    %v486 = vrcp.pop %v485
    %v487 = vmul.f32 %v485, %v486
    %v488 = vsub.f32 1.0, %v487
    %v489 = vmul.f32 %v486, %v488
    %v490 = vadd.f32 %v486, %v489
    %vm491 = vweird.f32 %v485
    %vm492 = vweird.f32 %v486
    %vm493 = vmor %vm491, %vm492
    %v494 = vsel %vm493, %v486, %v490
    %v495 = vand.u32 2147483647, %v485
    %vm496 = vcmp.eq.f32.partialorder %v495, 8.507059e+37
    %v497 = vand.u32 %v485, 2147483648
    %v498 = vor.u32 1.1754944e-38, %v497
    %v499 = vsel %vm496, %v498, %v494
    %v500 = vmul.f32 %v410, %v499
    %v501 = vadd.f32 %v500, 0.0
    %v502 = vadd.f32 %v442, 2.0
    %v503 = vlog2.pop %v502
    %v504 = vmul.f32 %v503, 0.6931472
    %v505 = vrcp.pop %v504
    %v506 = vmul.f32 %v504, %v505
    %v507 = vsub.f32 1.0, %v506
    %v508 = vmul.f32 %v505, %v507
    %v509 = vadd.f32 %v505, %v508
    %vm510 = vweird.f32 %v504
    %vm511 = vweird.f32 %v505
    %vm512 = vmor %vm510, %vm511
    %v513 = vsel %vm512, %v505, %v509
    %v514 = vand.u32 2147483647, %v504
    %vm515 = vcmp.eq.f32.partialorder %v514, 8.507059e+37
    %v516 = vand.u32 %v504, 2147483648
    %v517 = vor.u32 1.1754944e-38, %v516
    %v518 = vsel %vm515, %v517, %v513
    %v519 = vmul.f32 %v410, %v518
    %v520 = vadd.f32 %v519, 0.0
    %v521 = vmul.f32 %v432, 0.5
    %v522 = vadd.f32 %v521, 5.5
    %v523 = vlog2.pop %v522
    %v524 = vmul.f32 %v523, 0.6931472
    %v525 = vrcp.pop %v524
    %v526 = vmul.f32 %v524, %v525
    %v527 = vsub.f32 1.0, %v526
    %v528 = vmul.f32 %v525, %v527
    %v529 = vadd.f32 %v525, %v528
    %vm530 = vweird.f32 %v524
    %vm531 = vweird.f32 %v525
    %vm532 = vmor %vm530, %vm531
    %v533 = vsel %vm532, %v525, %v529
    %v534 = vand.u32 2147483647, %v524
    %vm535 = vcmp.eq.f32.partialorder %v534, 8.507059e+37
    %v536 = vand.u32 %v524, 2147483648
    %v537 = vor.u32 1.1754944e-38, %v536
    %v538 = vsel %vm535, %v537, %v533
    %v539 = vmul.f32 %v410, %v538
    %v540 = vadd.f32 %v539, 0.0
    %v541 = vadd.f32 %v452, 2.0
    %v542 = vlog2.pop %v541
    %v543 = vmul.f32 %v542, 0.6931472
    %v544 = vrcp.pop %v543
    %v545 = vmul.f32 %v543, %v544
    %v546 = vsub.f32 1.0, %v545
    %v547 = vmul.f32 %v544, %v546
    %v548 = vadd.f32 %v544, %v547
    %vm549 = vweird.f32 %v543
    %vm550 = vweird.f32 %v544
    %vm551 = vmor %vm549, %vm550
    %v552 = vsel %vm551, %v544, %v548
    %v553 = vand.u32 2147483647, %v543
    %vm554 = vcmp.eq.f32.partialorder %v553, 8.507059e+37
    %v555 = vand.u32 %v543, 2147483648
    %v556 = vor.u32 1.1754944e-38, %v555
    %v557 = vsel %vm554, %v556, %v552
    %v558 = vmul.f32 %v410, %v557
    %v559 = vadd.f32 %v558, 0.0
    %v560 = vld [vmem:[#allocation2 + $0x1] sm:$0x1]
    %v561 = vld [vmem:[#allocation3 + $0x1] sm:$0x1]
    %v562 = vld [vmem:[#allocation4 + $0x1] sm:$0x1]
    %v563 = vperm.slane %v560, 0
    %v564 = vsub.f32 %v403, %v563
    %v565 = vperm.slane %v561, 0
    %v566 = vsub.f32 %v404, %v565
    %v567 = vperm.slane %v562, 0
    %v568 = vsub.f32 %v402, %v567
    %v569 = vtanh.pop %v564
    %v570 = vsel %vm143, %v569, 0.0
    %v571 = vrot.slane %v570, 4
    %v572 = vadd.f32 %v570, %v571
    %v573 = vrot.slane %v572, 2
    %v574 = vadd.f32 %v572, %v573
    %v575 = vrot.slane %v574, 1
    %v576 = vadd.f32 %v574, %v575
    %v577 = vtanh.pop %v566
    %v578 = vsel %vm143, %v577, 0.0
    %v579 = vrot.slane %v578, 4
    %v580 = vadd.f32 %v578, %v579
    %v581 = vrot.slane %v580, 2
    %v582 = vadd.f32 %v580, %v581
    %v583 = vrot.slane %v582, 1
    %v584 = vadd.f32 %v582, %v583
    %vm585 = vcmp.gt.f32.partialorder %v564, 0.0
    %v586 = vsel %vm585, 1, 0
    %v587 = vcvt.s32.f32 %v586
    %v588 = vsel %vm143, %v587, 0.0
    %v589 = vrot.slane %v588, 4
    %v590 = vadd.f32 %v588, %v589
    %v591 = vrot.slane %v590, 2
    %v592 = vadd.f32 %v590, %v591
    %v593 = vrot.slane %v592, 1
    %v594 = vadd.f32 %v592, %v593
    %vm595 = vcmp.gt.f32.partialorder %v566, 0.0
    %v596 = vsel %vm595, 1, 0
    %v597 = vcvt.s32.f32 %v596
    %v598 = vsel %vm143, %v597, 0.0
    %v599 = vrot.slane %v598, 4
    %v600 = vadd.f32 %v598, %v599
    %v601 = vrot.slane %v600, 2
    %v602 = vadd.f32 %v600, %v601
    %v603 = vrot.slane %v602, 1
    %v604 = vadd.f32 %v602, %v603
    %vm605 = vcmp.gt.f32.partialorder %v568, 0.0
    %v606 = vsel %vm605, 1, 0
    %v607 = vcvt.s32.f32 %v606
    %v608 = vsel %vm143, %v607, 0.0
    %v609 = vrot.slane %v608, 4
    %v610 = vadd.f32 %v608, %v609
    %v611 = vrot.slane %v610, 2
    %v612 = vadd.f32 %v610, %v611
    %v613 = vrot.slane %v612, 1
    %v614 = vadd.f32 %v612, %v613
    %v615 = vadd.f32 %v614, 2.0
    %v616 = vlog2.pop %v615
    %v617 = vmul.f32 %v616, 0.6931472
    %v618 = vrcp.pop %v617
    %v619 = vmul.f32 %v617, %v618
    %v620 = vsub.f32 1.0, %v619
    %v621 = vmul.f32 %v618, %v620
    %v622 = vadd.f32 %v618, %v621
    %vm623 = vweird.f32 %v617
    %vm624 = vweird.f32 %v618
    %vm625 = vmor %vm623, %vm624
    %v626 = vsel %vm625, %v618, %v622
    %v627 = vand.u32 2147483647, %v617
    %vm628 = vcmp.eq.f32.partialorder %v627, 8.507059e+37
    %v629 = vand.u32 %v617, 2147483648
    %v630 = vor.u32 1.1754944e-38, %v629
    %v631 = vsel %vm628, %v630, %v626
    %v632 = vmul.f32 %v562, %v631
    %v633 = vadd.f32 %v481, %v632
    %v634 = vmul.f32 %v576, 0.5
    %v635 = vadd.f32 %v634, 5.5
    %v636 = vlog2.pop %v635
    %v637 = vmul.f32 %v636, 0.6931472
    %v638 = vrcp.pop %v637
    %v639 = vmul.f32 %v637, %v638
    %v640 = vsub.f32 1.0, %v639
    %v641 = vmul.f32 %v638, %v640
    %v642 = vadd.f32 %v638, %v641
    %vm643 = vweird.f32 %v637
    %vm644 = vweird.f32 %v638
    %vm645 = vmor %vm643, %vm644
    %v646 = vsel %vm645, %v638, %v642
    %v647 = vand.u32 2147483647, %v637
    %vm648 = vcmp.eq.f32.partialorder %v647, 8.507059e+37
    %v649 = vand.u32 %v637, 2147483648
    %v650 = vor.u32 1.1754944e-38, %v649
    %v651 = vsel %vm648, %v650, %v646
    %v652 = vmul.f32 %v562, %v651
    %v653 = vadd.f32 %v501, %v652
    %v654 = vadd.f32 %v594, 2.0
    %v655 = vlog2.pop %v654
    %v656 = vmul.f32 %v655, 0.6931472
    %v657 = vrcp.pop %v656
    %v658 = vmul.f32 %v656, %v657
    %v659 = vsub.f32 1.0, %v658
    %v660 = vmul.f32 %v657, %v659
    %v661 = vadd.f32 %v657, %v660
    %vm662 = vweird.f32 %v656
    %vm663 = vweird.f32 %v657
    %vm664 = vmor %vm662, %vm663
    %v665 = vsel %vm664, %v657, %v661
    %v666 = vand.u32 2147483647, %v656
    %vm667 = vcmp.eq.f32.partialorder %v666, 8.507059e+37
    %v668 = vand.u32 %v656, 2147483648
    %v669 = vor.u32 1.1754944e-38, %v668
    %v670 = vsel %vm667, %v669, %v665
    %v671 = vmul.f32 %v562, %v670
    %v672 = vadd.f32 %v520, %v671
    %v673 = vmul.f32 %v584, 0.5
    %v674 = vadd.f32 %v673, 5.5
    %v675 = vlog2.pop %v674
    %v676 = vmul.f32 %v675, 0.6931472
    %v677 = vrcp.pop %v676
    %v678 = vmul.f32 %v676, %v677
    %v679 = vsub.f32 1.0, %v678
    %v680 = vmul.f32 %v677, %v679
    %v681 = vadd.f32 %v677, %v680
    %vm682 = vweird.f32 %v676
    %vm683 = vweird.f32 %v677
    %vm684 = vmor %vm682, %vm683
    %v685 = vsel %vm684, %v677, %v681
    %v686 = vand.u32 2147483647, %v676
    %vm687 = vcmp.eq.f32.partialorder %v686, 8.507059e+37
    %v688 = vand.u32 %v676, 2147483648
    %v689 = vor.u32 1.1754944e-38, %v688
    %v690 = vsel %vm687, %v689, %v685
    %v691 = vmul.f32 %v562, %v690
    %v692 = vadd.f32 %v540, %v691
    %v693 = vadd.f32 %v604, 2.0
    %v694 = vlog2.pop %v693
    %v695 = vmul.f32 %v694, 0.6931472
    %v696 = vrcp.pop %v695
    %v697 = vmul.f32 %v695, %v696
    %v698 = vsub.f32 1.0, %v697
    %v699 = vmul.f32 %v696, %v698
    %v700 = vadd.f32 %v696, %v699
    %vm701 = vweird.f32 %v695
    %vm702 = vweird.f32 %v696
    %vm703 = vmor %vm701, %vm702
    %v704 = vsel %vm703, %v696, %v700
    %v705 = vand.u32 2147483647, %v695
    %vm706 = vcmp.eq.f32.partialorder %v705, 8.507059e+37
    %v707 = vand.u32 %v695, 2147483648
    %v708 = vor.u32 1.1754944e-38, %v707
    %v709 = vsel %vm706, %v708, %v704
    %v710 = vmul.f32 %v562, %v709
    %v711 = vadd.f32 %v559, %v710
    %v712 = vld [vmem:[#allocation2 + $0x2] sm:$0x1]
    %v713 = vld [vmem:[#allocation3 + $0x2] sm:$0x1]
    %v714 = vld [vmem:[#allocation4 + $0x2] sm:$0x1]
    %v715 = vperm.slane %v712, 0
    %v716 = vsub.f32 %v403, %v715
    %v717 = vperm.slane %v713, 0
    %v718 = vsub.f32 %v404, %v717
    %v719 = vperm.slane %v714, 0
    %v720 = vsub.f32 %v402, %v719
    %v721 = vtanh.pop %v716
    %v722 = vsel %vm143, %v721, 0.0
    %v723 = vrot.slane %v722, 4
    %v724 = vadd.f32 %v722, %v723
    %v725 = vrot.slane %v724, 2
    %v726 = vadd.f32 %v724, %v725
    %v727 = vrot.slane %v726, 1
    %v728 = vadd.f32 %v726, %v727
    %v729 = vtanh.pop %v718
    %v730 = vsel %vm143, %v729, 0.0
    %v731 = vrot.slane %v730, 4
    %v732 = vadd.f32 %v730, %v731
    %v733 = vrot.slane %v732, 2
    %v734 = vadd.f32 %v732, %v733
    %v735 = vrot.slane %v734, 1
    %v736 = vadd.f32 %v734, %v735
    %vm737 = vcmp.gt.f32.partialorder %v716, 0.0
    %v738 = vsel %vm737, 1, 0
    %v739 = vcvt.s32.f32 %v738
    %v740 = vsel %vm143, %v739, 0.0
    %v741 = vrot.slane %v740, 4
    %v742 = vadd.f32 %v740, %v741
    %v743 = vrot.slane %v742, 2
    %v744 = vadd.f32 %v742, %v743
    %v745 = vrot.slane %v744, 1
    %v746 = vadd.f32 %v744, %v745
    %vm747 = vcmp.gt.f32.partialorder %v718, 0.0
    %v748 = vsel %vm747, 1, 0
    %v749 = vcvt.s32.f32 %v748
    %v750 = vsel %vm143, %v749, 0.0
    %v751 = vrot.slane %v750, 4
    %v752 = vadd.f32 %v750, %v751
    %v753 = vrot.slane %v752, 2
    %v754 = vadd.f32 %v752, %v753
    %v755 = vrot.slane %v754, 1
    %v756 = vadd.f32 %v754, %v755
    %vm757 = vcmp.gt.f32.partialorder %v720, 0.0
    %v758 = vsel %vm757, 1, 0
    %v759 = vcvt.s32.f32 %v758
    %v760 = vsel %vm143, %v759, 0.0
    %v761 = vrot.slane %v760, 4
    %v762 = vadd.f32 %v760, %v761
    %v763 = vrot.slane %v762, 2
    %v764 = vadd.f32 %v762, %v763
    %v765 = vrot.slane %v764, 1
    %v766 = vadd.f32 %v764, %v765
    %v767 = vadd.f32 %v766, 2.0
    %v768 = vlog2.pop %v767
    %v769 = vmul.f32 %v768, 0.6931472
    %v770 = vrcp.pop %v769
    %v771 = vmul.f32 %v769, %v770
    %v772 = vsub.f32 1.0, %v771
    %v773 = vmul.f32 %v770, %v772
    %v774 = vadd.f32 %v770, %v773
    %vm775 = vweird.f32 %v769
    %vm776 = vweird.f32 %v770
    %vm777 = vmor %vm775, %vm776
    %v778 = vsel %vm777, %v770, %v774
    %v779 = vand.u32 2147483647, %v769
    %vm780 = vcmp.eq.f32.partialorder %v779, 8.507059e+37
    %v781 = vand.u32 %v769, 2147483648
    %v782 = vor.u32 1.1754944e-38, %v781
    %v783 = vsel %vm780, %v782, %v778
    %v784 = vmul.f32 %v714, %v783
    %v785 = vadd.f32 %v633, %v784
    %v786 = vmul.f32 %v728, 0.5
    %v787 = vadd.f32 %v786, 5.5
    %v788 = vlog2.pop %v787
    %v789 = vmul.f32 %v788, 0.6931472
    %v790 = vrcp.pop %v789
    %v791 = vmul.f32 %v789, %v790
    %v792 = vsub.f32 1.0, %v791
    %v793 = vmul.f32 %v790, %v792
    %v794 = vadd.f32 %v790, %v793
    %vm795 = vweird.f32 %v789
    %vm796 = vweird.f32 %v790
    %vm797 = vmor %vm795, %vm796
    %v798 = vsel %vm797, %v790, %v794
    %v799 = vand.u32 2147483647, %v789
    %vm800 = vcmp.eq.f32.partialorder %v799, 8.507059e+37
    %v801 = vand.u32 %v789, 2147483648
    %v802 = vor.u32 1.1754944e-38, %v801
    %v803 = vsel %vm800, %v802, %v798
    %v804 = vmul.f32 %v714, %v803
    %v805 = vadd.f32 %v653, %v804
    %v806 = vadd.f32 %v746, 2.0
    %v807 = vlog2.pop %v806
    %v808 = vmul.f32 %v807, 0.6931472
    %v809 = vrcp.pop %v808
    %v810 = vmul.f32 %v808, %v809
    %v811 = vsub.f32 1.0, %v810
    %v812 = vmul.f32 %v809, %v811
    %v813 = vadd.f32 %v809, %v812
    %vm814 = vweird.f32 %v808
    %vm815 = vweird.f32 %v809
    %vm816 = vmor %vm814, %vm815
    %v817 = vsel %vm816, %v809, %v813
    %v818 = vand.u32 2147483647, %v808
    %vm819 = vcmp.eq.f32.partialorder %v818, 8.507059e+37
    %v820 = vand.u32 %v808, 2147483648
    %v821 = vor.u32 1.1754944e-38, %v820
    %v822 = vsel %vm819, %v821, %v817
    %v823 = vmul.f32 %v714, %v822
    %v824 = vadd.f32 %v672, %v823
    %v825 = vmul.f32 %v736, 0.5
    %v826 = vadd.f32 %v825, 5.5
    %v827 = vlog2.pop %v826
    %v828 = vmul.f32 %v827, 0.6931472
    %v829 = vrcp.pop %v828
    %v830 = vmul.f32 %v828, %v829
    %v831 = vsub.f32 1.0, %v830
    %v832 = vmul.f32 %v829, %v831
    %v833 = vadd.f32 %v829, %v832
    %vm834 = vweird.f32 %v828
    %vm835 = vweird.f32 %v829
    %vm836 = vmor %vm834, %vm835
    %v837 = vsel %vm836, %v829, %v833
    %v838 = vand.u32 2147483647, %v828
    %vm839 = vcmp.eq.f32.partialorder %v838, 8.507059e+37
    %v840 = vand.u32 %v828, 2147483648
    %v841 = vor.u32 1.1754944e-38, %v840
    %v842 = vsel %vm839, %v841, %v837
    %v843 = vmul.f32 %v714, %v842
    %v844 = vadd.f32 %v692, %v843
    %v845 = vadd.f32 %v756, 2.0
    %v846 = vlog2.pop %v845
    %v847 = vmul.f32 %v846, 0.6931472
    %v848 = vrcp.pop %v847
    %v849 = vmul.f32 %v847, %v848
    %v850 = vsub.f32 1.0, %v849
    %v851 = vmul.f32 %v848, %v850
    %v852 = vadd.f32 %v848, %v851
    %vm853 = vweird.f32 %v847
    %vm854 = vweird.f32 %v848
    %vm855 = vmor %vm853, %vm854
    %v856 = vsel %vm855, %v848, %v852
    %v857 = vand.u32 2147483647, %v847
    %vm858 = vcmp.eq.f32.partialorder %v857, 8.507059e+37
    %v859 = vand.u32 %v847, 2147483648
    %v860 = vor.u32 1.1754944e-38, %v859
    %v861 = vsel %vm858, %v860, %v856
    %v862 = vmul.f32 %v714, %v861
    %v863 = vadd.f32 %v711, %v862
    %v864 = vld [vmem:[#allocation2 + $0x3] sm:$0x1]
    %v865 = vld [vmem:[#allocation3 + $0x3] sm:$0x1]
    %v866 = vld [vmem:[#allocation4 + $0x3] sm:$0x1]
    %v867 = vperm.slane %v864, 0
    %v868 = vsub.f32 %v403, %v867
    %v869 = vperm.slane %v865, 0
    %v870 = vsub.f32 %v404, %v869
    %v871 = vperm.slane %v866, 0
    %v872 = vsub.f32 %v402, %v871
    %v873 = vtanh.pop %v868
    %v874 = vsel %vm143, %v873, 0.0
    %v875 = vrot.slane %v874, 4
    %v876 = vadd.f32 %v874, %v875
    %v877 = vrot.slane %v876, 2
    %v878 = vadd.f32 %v876, %v877
    %v879 = vrot.slane %v878, 1
    %v880 = vadd.f32 %v878, %v879
    %v881 = vtanh.pop %v870
    %v882 = vsel %vm143, %v881, 0.0
    %v883 = vrot.slane %v882, 4
    %v884 = vadd.f32 %v882, %v883
    %v885 = vrot.slane %v884, 2
    %v886 = vadd.f32 %v884, %v885
    %v887 = vrot.slane %v886, 1
    %v888 = vadd.f32 %v886, %v887
    %vm889 = vcmp.gt.f32.partialorder %v868, 0.0
    %v890 = vsel %vm889, 1, 0
    %v891 = vcvt.s32.f32 %v890
    %v892 = vsel %vm143, %v891, 0.0
    %v893 = vrot.slane %v892, 4
    %v894 = vadd.f32 %v892, %v893
    %v895 = vrot.slane %v894, 2
    %v896 = vadd.f32 %v894, %v895
    %v897 = vrot.slane %v896, 1
    %v898 = vadd.f32 %v896, %v897
    %vm899 = vcmp.gt.f32.partialorder %v870, 0.0
    %v900 = vsel %vm899, 1, 0
    %v901 = vcvt.s32.f32 %v900
    %v902 = vsel %vm143, %v901, 0.0
    %v903 = vrot.slane %v902, 4
    %v904 = vadd.f32 %v902, %v903
    %v905 = vrot.slane %v904, 2
    %v906 = vadd.f32 %v904, %v905
    %v907 = vrot.slane %v906, 1
    %v908 = vadd.f32 %v906, %v907
    %vm909 = vcmp.gt.f32.partialorder %v872, 0.0
    %v910 = vsel %vm909, 1, 0
    %v911 = vcvt.s32.f32 %v910
    %v912 = vsel %vm143, %v911, 0.0
    %v913 = vrot.slane %v912, 4
    %v914 = vadd.f32 %v912, %v913
    %v915 = vrot.slane %v914, 2
    %v916 = vadd.f32 %v914, %v915
    %v917 = vrot.slane %v916, 1
    %v918 = vadd.f32 %v916, %v917
    %v919 = vadd.f32 %v918, 2.0
    %v920 = vlog2.pop %v919
    %v921 = vmul.f32 %v920, 0.6931472
    %v922 = vrcp.pop %v921
    %v923 = vmul.f32 %v921, %v922
    %v924 = vsub.f32 1.0, %v923
    %v925 = vmul.f32 %v922, %v924
    %v926 = vadd.f32 %v922, %v925
    %vm927 = vweird.f32 %v921
    %vm928 = vweird.f32 %v922
    %vm929 = vmor %vm927, %vm928
    %v930 = vsel %vm929, %v922, %v926
    %v931 = vand.u32 2147483647, %v921
    %vm932 = vcmp.eq.f32.partialorder %v931, 8.507059e+37
    %v933 = vand.u32 %v921, 2147483648
    %v934 = vor.u32 1.1754944e-38, %v933
    %v935 = vsel %vm932, %v934, %v930
    %v936 = vmul.f32 %v866, %v935
    %v937 = vadd.f32 %v785, %v936
    %v938 = vmul.f32 %v880, 0.5
    %v939 = vadd.f32 %v938, 5.5
    %v940 = vlog2.pop %v939
    %v941 = vmul.f32 %v940, 0.6931472
    %v942 = vrcp.pop %v941
    %v943 = vmul.f32 %v941, %v942
    %v944 = vsub.f32 1.0, %v943
    %v945 = vmul.f32 %v942, %v944
    %v946 = vadd.f32 %v942, %v945
    %vm947 = vweird.f32 %v941
    %vm948 = vweird.f32 %v942
    %vm949 = vmor %vm947, %vm948
    %v950 = vsel %vm949, %v942, %v946
    %v951 = vand.u32 2147483647, %v941
    %vm952 = vcmp.eq.f32.partialorder %v951, 8.507059e+37
    %v953 = vand.u32 %v941, 2147483648
    %v954 = vor.u32 1.1754944e-38, %v953
    %v955 = vsel %vm952, %v954, %v950
    %v956 = vmul.f32 %v866, %v955
    %v957 = vadd.f32 %v805, %v956
    %v958 = vadd.f32 %v898, 2.0
    %v959 = vlog2.pop %v958
    %v960 = vmul.f32 %v959, 0.6931472
    %v961 = vrcp.pop %v960
    %v962 = vmul.f32 %v960, %v961
    %v963 = vsub.f32 1.0, %v962
    %v964 = vmul.f32 %v961, %v963
    %v965 = vadd.f32 %v961, %v964
    %vm966 = vweird.f32 %v960
    %vm967 = vweird.f32 %v961
    %vm968 = vmor %vm966, %vm967
    %v969 = vsel %vm968, %v961, %v965
    %v970 = vand.u32 2147483647, %v960
    %vm971 = vcmp.eq.f32.partialorder %v970, 8.507059e+37
    %v972 = vand.u32 %v960, 2147483648
    %v973 = vor.u32 1.1754944e-38, %v972
    %v974 = vsel %vm971, %v973, %v969
    %v975 = vmul.f32 %v866, %v974
    %v976 = vadd.f32 %v824, %v975
    %v977 = vmul.f32 %v888, 0.5
    %v978 = vadd.f32 %v977, 5.5
    %v979 = vlog2.pop %v978
    %v980 = vmul.f32 %v979, 0.6931472
    %v981 = vrcp.pop %v980
    %v982 = vmul.f32 %v980, %v981
    %v983 = vsub.f32 1.0, %v982
    %v984 = vmul.f32 %v981, %v983
    %v985 = vadd.f32 %v981, %v984
    %vm986 = vweird.f32 %v980
    %vm987 = vweird.f32 %v981
    %vm988 = vmor %vm986, %vm987
    %v989 = vsel %vm988, %v981, %v985
    %v990 = vand.u32 2147483647, %v980
    %vm991 = vcmp.eq.f32.partialorder %v990, 8.507059e+37
    %v992 = vand.u32 %v980, 2147483648
    %v993 = vor.u32 1.1754944e-38, %v992
    %v994 = vsel %vm991, %v993, %v989
    %v995 = vmul.f32 %v866, %v994
    %v996 = vadd.f32 %v844, %v995
    %v997 = vadd.f32 %v908, 2.0
    %v998 = vlog2.pop %v997
    %v999 = vmul.f32 %v998, 0.6931472
    %v1000 = vrcp.pop %v999
    %v1001 = vmul.f32 %v999, %v1000
    %v1002 = vsub.f32 1.0, %v1001
    %v1003 = vmul.f32 %v1000, %v1002
    %v1004 = vadd.f32 %v1000, %v1003
    %vm1005 = vweird.f32 %v999
    %vm1006 = vweird.f32 %v1000
    %vm1007 = vmor %vm1005, %vm1006
    %v1008 = vsel %vm1007, %v1000, %v1004
    %v1009 = vand.u32 2147483647, %v999
    %vm1010 = vcmp.eq.f32.partialorder %v1009, 8.507059e+37
    %v1011 = vand.u32 %v999, 2147483648
    %v1012 = vor.u32 1.1754944e-38, %v1011
    %v1013 = vsel %vm1010, %v1012, %v1008
    %v1014 = vmul.f32 %v866, %v1013
    %v1015 = vadd.f32 %v863, %v1014
    %v1016 = vld [vmem:[#allocation2 + $0x4] sm:$0x1]
    %v1017 = vld [vmem:[#allocation3 + $0x4] sm:$0x1]
    %v1018 = vld [vmem:[#allocation4 + $0x4] sm:$0x1]
    %v1019 = vperm.slane %v1016, 0
    %v1020 = vsub.f32 %v403, %v1019
    %v1021 = vperm.slane %v1017, 0
    %v1022 = vsub.f32 %v404, %v1021
    %v1023 = vperm.slane %v1018, 0
    %v1024 = vsub.f32 %v402, %v1023
    %v1025 = vtanh.pop %v1020
    %v1026 = vsel %vm143, %v1025, 0.0
    %v1027 = vrot.slane %v1026, 4
    %v1028 = vadd.f32 %v1026, %v1027
    %v1029 = vrot.slane %v1028, 2
    %v1030 = vadd.f32 %v1028, %v1029
    %v1031 = vrot.slane %v1030, 1
    %v1032 = vadd.f32 %v1030, %v1031
    %v1033 = vtanh.pop %v1022
    %v1034 = vsel %vm143, %v1033, 0.0
    %v1035 = vrot.slane %v1034, 4
    %v1036 = vadd.f32 %v1034, %v1035
    %v1037 = vrot.slane %v1036, 2
    %v1038 = vadd.f32 %v1036, %v1037
    %v1039 = vrot.slane %v1038, 1
    %v1040 = vadd.f32 %v1038, %v1039
    %vm1041 = vcmp.gt.f32.partialorder %v1020, 0.0
    %v1042 = vsel %vm1041, 1, 0
    %v1043 = vcvt.s32.f32 %v1042
    %v1044 = vsel %vm143, %v1043, 0.0
    %v1045 = vrot.slane %v1044, 4
    %v1046 = vadd.f32 %v1044, %v1045
    %v1047 = vrot.slane %v1046, 2
    %v1048 = vadd.f32 %v1046, %v1047
    %v1049 = vrot.slane %v1048, 1
    %v1050 = vadd.f32 %v1048, %v1049
    %vm1051 = vcmp.gt.f32.partialorder %v1022, 0.0
    %v1052 = vsel %vm1051, 1, 0
    %v1053 = vcvt.s32.f32 %v1052
    %v1054 = vsel %vm143, %v1053, 0.0
    %v1055 = vrot.slane %v1054, 4
    %v1056 = vadd.f32 %v1054, %v1055
    %v1057 = vrot.slane %v1056, 2
    %v1058 = vadd.f32 %v1056, %v1057
    %v1059 = vrot.slane %v1058, 1
    %v1060 = vadd.f32 %v1058, %v1059
    %vm1061 = vcmp.gt.f32.partialorder %v1024, 0.0
    %v1062 = vsel %vm1061, 1, 0
    %v1063 = vcvt.s32.f32 %v1062
    %v1064 = vsel %vm143, %v1063, 0.0
    %v1065 = vrot.slane %v1064, 4
    %v1066 = vadd.f32 %v1064, %v1065
    %v1067 = vrot.slane %v1066, 2
    %v1068 = vadd.f32 %v1066, %v1067
    %v1069 = vrot.slane %v1068, 1
    %v1070 = vadd.f32 %v1068, %v1069
    %v1071 = vadd.f32 %v1070, 2.0
    %v1072 = vlog2.pop %v1071
    %v1073 = vmul.f32 %v1072, 0.6931472
    %v1074 = vrcp.pop %v1073
    %v1075 = vmul.f32 %v1073, %v1074
    %v1076 = vsub.f32 1.0, %v1075
    %v1077 = vmul.f32 %v1074, %v1076
    %v1078 = vadd.f32 %v1074, %v1077
    %vm1079 = vweird.f32 %v1073
    %vm1080 = vweird.f32 %v1074
    %vm1081 = vmor %vm1079, %vm1080
    %v1082 = vsel %vm1081, %v1074, %v1078
    %v1083 = vand.u32 2147483647, %v1073
    %vm1084 = vcmp.eq.f32.partialorder %v1083, 8.507059e+37
    %v1085 = vand.u32 %v1073, 2147483648
    %v1086 = vor.u32 1.1754944e-38, %v1085
    %v1087 = vsel %vm1084, %v1086, %v1082
    %v1088 = vmul.f32 %v1018, %v1087
    %v1089 = vadd.f32 %v937, %v1088
    %v1090 = vmul.f32 %v1032, 0.5
    %v1091 = vadd.f32 %v1090, 5.5
    %v1092 = vlog2.pop %v1091
    %v1093 = vmul.f32 %v1092, 0.6931472
    %v1094 = vrcp.pop %v1093
    %v1095 = vmul.f32 %v1093, %v1094
    %v1096 = vsub.f32 1.0, %v1095
    %v1097 = vmul.f32 %v1094, %v1096
    %v1098 = vadd.f32 %v1094, %v1097
    %vm1099 = vweird.f32 %v1093
    %vm1100 = vweird.f32 %v1094
    %vm1101 = vmor %vm1099, %vm1100
    %v1102 = vsel %vm1101, %v1094, %v1098
    %v1103 = vand.u32 2147483647, %v1093
    %vm1104 = vcmp.eq.f32.partialorder %v1103, 8.507059e+37
    %v1105 = vand.u32 %v1093, 2147483648
    %v1106 = vor.u32 1.1754944e-38, %v1105
    %v1107 = vsel %vm1104, %v1106, %v1102
    %v1108 = vmul.f32 %v1018, %v1107
    %v1109 = vadd.f32 %v957, %v1108
    %v1110 = vadd.f32 %v1050, 2.0
    %v1111 = vlog2.pop %v1110
    %v1112 = vmul.f32 %v1111, 0.6931472
    %v1113 = vrcp.pop %v1112
    %v1114 = vmul.f32 %v1112, %v1113
    %v1115 = vsub.f32 1.0, %v1114
    %v1116 = vmul.f32 %v1113, %v1115
    %v1117 = vadd.f32 %v1113, %v1116
    %vm1118 = vweird.f32 %v1112
    %vm1119 = vweird.f32 %v1113
    %vm1120 = vmor %vm1118, %vm1119
    %v1121 = vsel %vm1120, %v1113, %v1117
    %v1122 = vand.u32 2147483647, %v1112
    %vm1123 = vcmp.eq.f32.partialorder %v1122, 8.507059e+37
    %v1124 = vand.u32 %v1112, 2147483648
    %v1125 = vor.u32 1.1754944e-38, %v1124
    %v1126 = vsel %vm1123, %v1125, %v1121
    %v1127 = vmul.f32 %v1018, %v1126
    %v1128 = vadd.f32 %v976, %v1127
    %v1129 = vmul.f32 %v1040, 0.5
    %v1130 = vadd.f32 %v1129, 5.5
    %v1131 = vlog2.pop %v1130
    %v1132 = vmul.f32 %v1131, 0.6931472
    %v1133 = vrcp.pop %v1132
    %v1134 = vmul.f32 %v1132, %v1133
    %v1135 = vsub.f32 1.0, %v1134
    %v1136 = vmul.f32 %v1133, %v1135
    %v1137 = vadd.f32 %v1133, %v1136
    %vm1138 = vweird.f32 %v1132
    %vm1139 = vweird.f32 %v1133
    %vm1140 = vmor %vm1138, %vm1139
    %v1141 = vsel %vm1140, %v1133, %v1137
    %v1142 = vand.u32 2147483647, %v1132
    %vm1143 = vcmp.eq.f32.partialorder %v1142, 8.507059e+37
    %v1144 = vand.u32 %v1132, 2147483648
    %v1145 = vor.u32 1.1754944e-38, %v1144
    %v1146 = vsel %vm1143, %v1145, %v1141
    %v1147 = vmul.f32 %v1018, %v1146
    %v1148 = vadd.f32 %v996, %v1147
    %v1149 = vadd.f32 %v1060, 2.0
    %v1150 = vlog2.pop %v1149
    %v1151 = vmul.f32 %v1150, 0.6931472
    %v1152 = vrcp.pop %v1151
    %v1153 = vmul.f32 %v1151, %v1152
    %v1154 = vsub.f32 1.0, %v1153
    %v1155 = vmul.f32 %v1152, %v1154
    %v1156 = vadd.f32 %v1152, %v1155
    %vm1157 = vweird.f32 %v1151
    %vm1158 = vweird.f32 %v1152
    %vm1159 = vmor %vm1157, %vm1158
    %v1160 = vsel %vm1159, %v1152, %v1156
    %v1161 = vand.u32 2147483647, %v1151
    %vm1162 = vcmp.eq.f32.partialorder %v1161, 8.507059e+37
    %v1163 = vand.u32 %v1151, 2147483648
    %v1164 = vor.u32 1.1754944e-38, %v1163
    %v1165 = vsel %vm1162, %v1164, %v1160
    %v1166 = vmul.f32 %v1018, %v1165
    %v1167 = vadd.f32 %v1015, %v1166
    %v1168 = vld [vmem:[#allocation2 + $0x5] sm:$0x1]
    %v1169 = vld [vmem:[#allocation3 + $0x5] sm:$0x1]
    %v1170 = vld [vmem:[#allocation4 + $0x5] sm:$0x1]
    %v1171 = vperm.slane %v1168, 0
    %v1172 = vsub.f32 %v403, %v1171
    %v1173 = vperm.slane %v1169, 0
    %v1174 = vsub.f32 %v404, %v1173
    %v1175 = vperm.slane %v1170, 0
    %v1176 = vsub.f32 %v402, %v1175
    %v1177 = vtanh.pop %v1172
    %v1178 = vsel %vm143, %v1177, 0.0
    %v1179 = vrot.slane %v1178, 4
    %v1180 = vadd.f32 %v1178, %v1179
    %v1181 = vrot.slane %v1180, 2
    %v1182 = vadd.f32 %v1180, %v1181
    %v1183 = vrot.slane %v1182, 1
    %v1184 = vadd.f32 %v1182, %v1183
    %v1185 = vtanh.pop %v1174
    %v1186 = vsel %vm143, %v1185, 0.0
    %v1187 = vrot.slane %v1186, 4
    %v1188 = vadd.f32 %v1186, %v1187
    %v1189 = vrot.slane %v1188, 2
    %v1190 = vadd.f32 %v1188, %v1189
    %v1191 = vrot.slane %v1190, 1
    %v1192 = vadd.f32 %v1190, %v1191
    %vm1193 = vcmp.gt.f32.partialorder %v1172, 0.0
    %v1194 = vsel %vm1193, 1, 0
    %v1195 = vcvt.s32.f32 %v1194
    %v1196 = vsel %vm143, %v1195, 0.0
    %v1197 = vrot.slane %v1196, 4
    %v1198 = vadd.f32 %v1196, %v1197
    %v1199 = vrot.slane %v1198, 2
    %v1200 = vadd.f32 %v1198, %v1199
    %v1201 = vrot.slane %v1200, 1
    %v1202 = vadd.f32 %v1200, %v1201
    %vm1203 = vcmp.gt.f32.partialorder %v1174, 0.0
    %v1204 = vsel %vm1203, 1, 0
    %v1205 = vcvt.s32.f32 %v1204
    %v1206 = vsel %vm143, %v1205, 0.0
    %v1207 = vrot.slane %v1206, 4
    %v1208 = vadd.f32 %v1206, %v1207
    %v1209 = vrot.slane %v1208, 2
    %v1210 = vadd.f32 %v1208, %v1209
    %v1211 = vrot.slane %v1210, 1
    %v1212 = vadd.f32 %v1210, %v1211
    %vm1213 = vcmp.gt.f32.partialorder %v1176, 0.0
    %v1214 = vsel %vm1213, 1, 0
    %v1215 = vcvt.s32.f32 %v1214
    %v1216 = vsel %vm143, %v1215, 0.0
    %v1217 = vrot.slane %v1216, 4
    %v1218 = vadd.f32 %v1216, %v1217
    %v1219 = vrot.slane %v1218, 2
    %v1220 = vadd.f32 %v1218, %v1219
    %v1221 = vrot.slane %v1220, 1
    %v1222 = vadd.f32 %v1220, %v1221
    %v1223 = vadd.f32 %v1222, 2.0
    %v1224 = vlog2.pop %v1223
    %v1225 = vmul.f32 %v1224, 0.6931472
    %v1226 = vrcp.pop %v1225
    %v1227 = vmul.f32 %v1225, %v1226
    %v1228 = vsub.f32 1.0, %v1227
    %v1229 = vmul.f32 %v1226, %v1228
    %v1230 = vadd.f32 %v1226, %v1229
    %vm1231 = vweird.f32 %v1225
    %vm1232 = vweird.f32 %v1226
    %vm1233 = vmor %vm1231, %vm1232
    %v1234 = vsel %vm1233, %v1226, %v1230
    %v1235 = vand.u32 2147483647, %v1225
    %vm1236 = vcmp.eq.f32.partialorder %v1235, 8.507059e+37
    %v1237 = vand.u32 %v1225, 2147483648
    %v1238 = vor.u32 1.1754944e-38, %v1237
    %v1239 = vsel %vm1236, %v1238, %v1234
    %v1240 = vmul.f32 %v1170, %v1239
    %v1241 = vadd.f32 %v1089, %v1240
    %v1242 = vmul.f32 %v1184, 0.5
    %v1243 = vadd.f32 %v1242, 5.5
    %v1244 = vlog2.pop %v1243
    %v1245 = vmul.f32 %v1244, 0.6931472
    %v1246 = vrcp.pop %v1245
    %v1247 = vmul.f32 %v1245, %v1246
    %v1248 = vsub.f32 1.0, %v1247
    %v1249 = vmul.f32 %v1246, %v1248
    %v1250 = vadd.f32 %v1246, %v1249
    %vm1251 = vweird.f32 %v1245
    %vm1252 = vweird.f32 %v1246
    %vm1253 = vmor %vm1251, %vm1252
    %v1254 = vsel %vm1253, %v1246, %v1250
    %v1255 = vand.u32 2147483647, %v1245
    %vm1256 = vcmp.eq.f32.partialorder %v1255, 8.507059e+37
    %v1257 = vand.u32 %v1245, 2147483648
    %v1258 = vor.u32 1.1754944e-38, %v1257
    %v1259 = vsel %vm1256, %v1258, %v1254
    %v1260 = vmul.f32 %v1170, %v1259
    %v1261 = vadd.f32 %v1109, %v1260
    %v1262 = vadd.f32 %v1202, 2.0
    %v1263 = vlog2.pop %v1262
    %v1264 = vmul.f32 %v1263, 0.6931472
    %v1265 = vrcp.pop %v1264
    %v1266 = vmul.f32 %v1264, %v1265
    %v1267 = vsub.f32 1.0, %v1266
    %v1268 = vmul.f32 %v1265, %v1267
    %v1269 = vadd.f32 %v1265, %v1268
    %vm1270 = vweird.f32 %v1264
    %vm1271 = vweird.f32 %v1265
    %vm1272 = vmor %vm1270, %vm1271
    %v1273 = vsel %vm1272, %v1265, %v1269
    %v1274 = vand.u32 2147483647, %v1264
    %vm1275 = vcmp.eq.f32.partialorder %v1274, 8.507059e+37
    %v1276 = vand.u32 %v1264, 2147483648
    %v1277 = vor.u32 1.1754944e-38, %v1276
    %v1278 = vsel %vm1275, %v1277, %v1273
    %v1279 = vmul.f32 %v1170, %v1278
    %v1280 = vadd.f32 %v1128, %v1279
    %v1281 = vmul.f32 %v1192, 0.5
    %v1282 = vadd.f32 %v1281, 5.5
    %v1283 = vlog2.pop %v1282
    %v1284 = vmul.f32 %v1283, 0.6931472
    %v1285 = vrcp.pop %v1284
    %v1286 = vmul.f32 %v1284, %v1285
    %v1287 = vsub.f32 1.0, %v1286
    %v1288 = vmul.f32 %v1285, %v1287
    %v1289 = vadd.f32 %v1285, %v1288
    %vm1290 = vweird.f32 %v1284
    %vm1291 = vweird.f32 %v1285
    %vm1292 = vmor %vm1290, %vm1291
    %v1293 = vsel %vm1292, %v1285, %v1289
    %v1294 = vand.u32 2147483647, %v1284
    %vm1295 = vcmp.eq.f32.partialorder %v1294, 8.507059e+37
    %v1296 = vand.u32 %v1284, 2147483648
    %v1297 = vor.u32 1.1754944e-38, %v1296
    %v1298 = vsel %vm1295, %v1297, %v1293
    %v1299 = vmul.f32 %v1170, %v1298
    %v1300 = vadd.f32 %v1148, %v1299
    %v1301 = vadd.f32 %v1212, 2.0
    %v1302 = vlog2.pop %v1301
    %v1303 = vmul.f32 %v1302, 0.6931472
    %v1304 = vrcp.pop %v1303
    %v1305 = vmul.f32 %v1303, %v1304
    %v1306 = vsub.f32 1.0, %v1305
    %v1307 = vmul.f32 %v1304, %v1306
    %v1308 = vadd.f32 %v1304, %v1307
    %vm1309 = vweird.f32 %v1303
    %vm1310 = vweird.f32 %v1304
    %vm1311 = vmor %vm1309, %vm1310
    %v1312 = vsel %vm1311, %v1304, %v1308
    %v1313 = vand.u32 2147483647, %v1303
    %vm1314 = vcmp.eq.f32.partialorder %v1313, 8.507059e+37
    %v1315 = vand.u32 %v1303, 2147483648
    %v1316 = vor.u32 1.1754944e-38, %v1315
    %v1317 = vsel %vm1314, %v1316, %v1312
    %v1318 = vmul.f32 %v1170, %v1317
    %v1319 = vadd.f32 %v1167, %v1318
    %v1320 = vld [vmem:[#allocation2 + $0x6] sm:$0x1]
    %v1321 = vld [vmem:[#allocation3 + $0x6] sm:$0x1]
    %v1322 = vld [vmem:[#allocation4 + $0x6] sm:$0x1]
    %v1323 = vperm.slane %v1320, 0
    %v1324 = vsub.f32 %v403, %v1323
    %v1325 = vperm.slane %v1321, 0
    %v1326 = vsub.f32 %v404, %v1325
    %v1327 = vperm.slane %v1322, 0
    %v1328 = vsub.f32 %v402, %v1327
    %v1329 = vtanh.pop %v1324
    %v1330 = vsel %vm143, %v1329, 0.0
    %v1331 = vrot.slane %v1330, 4
    %v1332 = vadd.f32 %v1330, %v1331
    %v1333 = vrot.slane %v1332, 2
    %v1334 = vadd.f32 %v1332, %v1333
    %v1335 = vrot.slane %v1334, 1
    %v1336 = vadd.f32 %v1334, %v1335
    %v1337 = vtanh.pop %v1326
    %v1338 = vsel %vm143, %v1337, 0.0
    %v1339 = vrot.slane %v1338, 4
    %v1340 = vadd.f32 %v1338, %v1339
    %v1341 = vrot.slane %v1340, 2
    %v1342 = vadd.f32 %v1340, %v1341
    %v1343 = vrot.slane %v1342, 1
    %v1344 = vadd.f32 %v1342, %v1343
    %vm1345 = vcmp.gt.f32.partialorder %v1324, 0.0
    %v1346 = vsel %vm1345, 1, 0
    %v1347 = vcvt.s32.f32 %v1346
    %v1348 = vsel %vm143, %v1347, 0.0
    %v1349 = vrot.slane %v1348, 4
    %v1350 = vadd.f32 %v1348, %v1349
    %v1351 = vrot.slane %v1350, 2
    %v1352 = vadd.f32 %v1350, %v1351
    %v1353 = vrot.slane %v1352, 1
    %v1354 = vadd.f32 %v1352, %v1353
    %vm1355 = vcmp.gt.f32.partialorder %v1326, 0.0
    %v1356 = vsel %vm1355, 1, 0
    %v1357 = vcvt.s32.f32 %v1356
    %v1358 = vsel %vm143, %v1357, 0.0
    %v1359 = vrot.slane %v1358, 4
    %v1360 = vadd.f32 %v1358, %v1359
    %v1361 = vrot.slane %v1360, 2
    %v1362 = vadd.f32 %v1360, %v1361
    %v1363 = vrot.slane %v1362, 1
    %v1364 = vadd.f32 %v1362, %v1363
    %vm1365 = vcmp.gt.f32.partialorder %v1328, 0.0
    %v1366 = vsel %vm1365, 1, 0
    %v1367 = vcvt.s32.f32 %v1366
    %v1368 = vsel %vm143, %v1367, 0.0
    %v1369 = vrot.slane %v1368, 4
    %v1370 = vadd.f32 %v1368, %v1369
    %v1371 = vrot.slane %v1370, 2
    %v1372 = vadd.f32 %v1370, %v1371
    %v1373 = vrot.slane %v1372, 1
    %v1374 = vadd.f32 %v1372, %v1373
    %v1375 = vadd.f32 %v1374, 2.0
    %v1376 = vlog2.pop %v1375
    %v1377 = vmul.f32 %v1376, 0.6931472
    %v1378 = vrcp.pop %v1377
    %v1379 = vmul.f32 %v1377, %v1378
    %v1380 = vsub.f32 1.0, %v1379
    %v1381 = vmul.f32 %v1378, %v1380
    %v1382 = vadd.f32 %v1378, %v1381
    %vm1383 = vweird.f32 %v1377
    %vm1384 = vweird.f32 %v1378
    %vm1385 = vmor %vm1383, %vm1384
    %v1386 = vsel %vm1385, %v1378, %v1382
    %v1387 = vand.u32 2147483647, %v1377
    %vm1388 = vcmp.eq.f32.partialorder %v1387, 8.507059e+37
    %v1389 = vand.u32 %v1377, 2147483648
    %v1390 = vor.u32 1.1754944e-38, %v1389
    %v1391 = vsel %vm1388, %v1390, %v1386
    %v1392 = vmul.f32 %v1322, %v1391
    %v1393 = vadd.f32 %v1241, %v1392
    %v1394 = vmul.f32 %v1336, 0.5
    %v1395 = vadd.f32 %v1394, 5.5
    %v1396 = vlog2.pop %v1395
    %v1397 = vmul.f32 %v1396, 0.6931472
    %v1398 = vrcp.pop %v1397
    %v1399 = vmul.f32 %v1397, %v1398
    %v1400 = vsub.f32 1.0, %v1399
    %v1401 = vmul.f32 %v1398, %v1400
    %v1402 = vadd.f32 %v1398, %v1401
    %vm1403 = vweird.f32 %v1397
    %vm1404 = vweird.f32 %v1398
    %vm1405 = vmor %vm1403, %vm1404
    %v1406 = vsel %vm1405, %v1398, %v1402
    %v1407 = vand.u32 2147483647, %v1397
    %vm1408 = vcmp.eq.f32.partialorder %v1407, 8.507059e+37
    %v1409 = vand.u32 %v1397, 2147483648
    %v1410 = vor.u32 1.1754944e-38, %v1409
    %v1411 = vsel %vm1408, %v1410, %v1406
    %v1412 = vmul.f32 %v1322, %v1411
    %v1413 = vadd.f32 %v1261, %v1412
    %v1414 = vadd.f32 %v1354, 2.0
    %v1415 = vlog2.pop %v1414
    %v1416 = vmul.f32 %v1415, 0.6931472
    %v1417 = vrcp.pop %v1416
    %v1418 = vmul.f32 %v1416, %v1417
    %v1419 = vsub.f32 1.0, %v1418
    %v1420 = vmul.f32 %v1417, %v1419
    %v1421 = vadd.f32 %v1417, %v1420
    %vm1422 = vweird.f32 %v1416
    %vm1423 = vweird.f32 %v1417
    %vm1424 = vmor %vm1422, %vm1423
    %v1425 = vsel %vm1424, %v1417, %v1421
    %v1426 = vand.u32 2147483647, %v1416
    %vm1427 = vcmp.eq.f32.partialorder %v1426, 8.507059e+37
    %v1428 = vand.u32 %v1416, 2147483648
    %v1429 = vor.u32 1.1754944e-38, %v1428
    %v1430 = vsel %vm1427, %v1429, %v1425
    %v1431 = vmul.f32 %v1322, %v1430
    %v1432 = vadd.f32 %v1280, %v1431
    %v1433 = vmul.f32 %v1344, 0.5
    %v1434 = vadd.f32 %v1433, 5.5
    %v1435 = vlog2.pop %v1434
    %v1436 = vmul.f32 %v1435, 0.6931472
    %v1437 = vrcp.pop %v1436
    %v1438 = vmul.f32 %v1436, %v1437
    %v1439 = vsub.f32 1.0, %v1438
    %v1440 = vmul.f32 %v1437, %v1439
    %v1441 = vadd.f32 %v1437, %v1440
    %vm1442 = vweird.f32 %v1436
    %vm1443 = vweird.f32 %v1437
    %vm1444 = vmor %vm1442, %vm1443
    %v1445 = vsel %vm1444, %v1437, %v1441
    %v1446 = vand.u32 2147483647, %v1436
    %vm1447 = vcmp.eq.f32.partialorder %v1446, 8.507059e+37
    %v1448 = vand.u32 %v1436, 2147483648
    %v1449 = vor.u32 1.1754944e-38, %v1448
    %v1450 = vsel %vm1447, %v1449, %v1445
    %v1451 = vmul.f32 %v1322, %v1450
    %v1452 = vadd.f32 %v1300, %v1451
    %v1453 = vadd.f32 %v1364, 2.0
    %v1454 = vlog2.pop %v1453
    %v1455 = vmul.f32 %v1454, 0.6931472
    %v1456 = vrcp.pop %v1455
    %v1457 = vmul.f32 %v1455, %v1456
    %v1458 = vsub.f32 1.0, %v1457
    %v1459 = vmul.f32 %v1456, %v1458
    %v1460 = vadd.f32 %v1456, %v1459
    %vm1461 = vweird.f32 %v1455
    %vm1462 = vweird.f32 %v1456
    %vm1463 = vmor %vm1461, %vm1462
    %v1464 = vsel %vm1463, %v1456, %v1460
    %v1465 = vand.u32 2147483647, %v1455
    %vm1466 = vcmp.eq.f32.partialorder %v1465, 8.507059e+37
    %v1467 = vand.u32 %v1455, 2147483648
    %v1468 = vor.u32 1.1754944e-38, %v1467
    %v1469 = vsel %vm1466, %v1468, %v1464
    %v1470 = vmul.f32 %v1322, %v1469
    %v1471 = vadd.f32 %v1319, %v1470
    %v1472 = vld [vmem:[#allocation2 + $0x7] sm:$0x1]
    %v1473 = vld [vmem:[#allocation3 + $0x7] sm:$0x1]
    %v1474 = vld [vmem:[#allocation4 + $0x7] sm:$0x1]
    %v1475 = vperm.slane %v1472, 0
    %v1476 = vsub.f32 %v403, %v1475
    %v1477 = vperm.slane %v1473, 0
    %v1478 = vsub.f32 %v404, %v1477
    %v1479 = vperm.slane %v1474, 0
    %v1480 = vsub.f32 %v402, %v1479
    %v1481 = vtanh.pop %v1476
    %v1482 = vsel %vm143, %v1481, 0.0
    %v1483 = vrot.slane %v1482, 4
    %v1484 = vadd.f32 %v1482, %v1483
    %v1485 = vrot.slane %v1484, 2
    %v1486 = vadd.f32 %v1484, %v1485
    %v1487 = vrot.slane %v1486, 1
    %v1488 = vadd.f32 %v1486, %v1487
    %v1489 = vtanh.pop %v1478
    %v1490 = vsel %vm143, %v1489, 0.0
    %v1491 = vrot.slane %v1490, 4
    %v1492 = vadd.f32 %v1490, %v1491
    %v1493 = vrot.slane %v1492, 2
    %v1494 = vadd.f32 %v1492, %v1493
    %v1495 = vrot.slane %v1494, 1
    %v1496 = vadd.f32 %v1494, %v1495
    %vm1497 = vcmp.gt.f32.partialorder %v1476, 0.0
    %v1498 = vsel %vm1497, 1, 0
    %v1499 = vcvt.s32.f32 %v1498
    %v1500 = vsel %vm143, %v1499, 0.0
    %v1501 = vrot.slane %v1500, 4
    %v1502 = vadd.f32 %v1500, %v1501
    %v1503 = vrot.slane %v1502, 2
    %v1504 = vadd.f32 %v1502, %v1503
    %v1505 = vrot.slane %v1504, 1
    %v1506 = vadd.f32 %v1504, %v1505
    %vm1507 = vcmp.gt.f32.partialorder %v1478, 0.0
    %v1508 = vsel %vm1507, 1, 0
    %v1509 = vcvt.s32.f32 %v1508
    %v1510 = vsel %vm143, %v1509, 0.0
    %v1511 = vrot.slane %v1510, 4
    %v1512 = vadd.f32 %v1510, %v1511
    %v1513 = vrot.slane %v1512, 2
    %v1514 = vadd.f32 %v1512, %v1513
    %v1515 = vrot.slane %v1514, 1
    %v1516 = vadd.f32 %v1514, %v1515
    %vm1517 = vcmp.gt.f32.partialorder %v1480, 0.0
    %v1518 = vsel %vm1517, 1, 0
    %v1519 = vcvt.s32.f32 %v1518
    %v1520 = vsel %vm143, %v1519, 0.0
    %v1521 = vrot.slane %v1520, 4
    %v1522 = vadd.f32 %v1520, %v1521
    %v1523 = vrot.slane %v1522, 2
    %v1524 = vadd.f32 %v1522, %v1523
    %v1525 = vrot.slane %v1524, 1
    %v1526 = vadd.f32 %v1524, %v1525
    %v1527 = vadd.f32 %v1526, 2.0
    %v1528 = vlog2.pop %v1527
    %v1529 = vmul.f32 %v1528, 0.6931472
    %v1530 = vrcp.pop %v1529
    %v1531 = vmul.f32 %v1529, %v1530
    %v1532 = vsub.f32 1.0, %v1531
    %v1533 = vmul.f32 %v1530, %v1532
    %v1534 = vadd.f32 %v1530, %v1533
    %vm1535 = vweird.f32 %v1529
    %vm1536 = vweird.f32 %v1530
    %vm1537 = vmor %vm1535, %vm1536
    %v1538 = vsel %vm1537, %v1530, %v1534
    %v1539 = vand.u32 2147483647, %v1529
    %vm1540 = vcmp.eq.f32.partialorder %v1539, 8.507059e+37
    %v1541 = vand.u32 %v1529, 2147483648
    %v1542 = vor.u32 1.1754944e-38, %v1541
    %v1543 = vsel %vm1540, %v1542, %v1538
    %v1544 = vmul.f32 %v1474, %v1543
    %v1545 = vadd.f32 %v1393, %v1544
    %v1546 = vmul.f32 %v1488, 0.5
    %v1547 = vadd.f32 %v1546, 5.5
    %v1548 = vlog2.pop %v1547
    %v1549 = vmul.f32 %v1548, 0.6931472
    %v1550 = vrcp.pop %v1549
    %v1551 = vmul.f32 %v1549, %v1550
    %v1552 = vsub.f32 1.0, %v1551
    %v1553 = vmul.f32 %v1550, %v1552
    %v1554 = vadd.f32 %v1550, %v1553
    %vm1555 = vweird.f32 %v1549
    %vm1556 = vweird.f32 %v1550
    %vm1557 = vmor %vm1555, %vm1556
    %v1558 = vsel %vm1557, %v1550, %v1554
    %v1559 = vand.u32 2147483647, %v1549
    %vm1560 = vcmp.eq.f32.partialorder %v1559, 8.507059e+37
    %v1561 = vand.u32 %v1549, 2147483648
    %v1562 = vor.u32 1.1754944e-38, %v1561
    %v1563 = vsel %vm1560, %v1562, %v1558
    %v1564 = vmul.f32 %v1474, %v1563
    %v1565 = vadd.f32 %v1413, %v1564
    %v1566 = vadd.f32 %v1506, 2.0
    %v1567 = vlog2.pop %v1566
    %v1568 = vmul.f32 %v1567, 0.6931472
    %v1569 = vrcp.pop %v1568
    %v1570 = vmul.f32 %v1568, %v1569
    %v1571 = vsub.f32 1.0, %v1570
    %v1572 = vmul.f32 %v1569, %v1571
    %v1573 = vadd.f32 %v1569, %v1572
    %vm1574 = vweird.f32 %v1568
    %vm1575 = vweird.f32 %v1569
    %vm1576 = vmor %vm1574, %vm1575
    %v1577 = vsel %vm1576, %v1569, %v1573
    %v1578 = vand.u32 2147483647, %v1568
    %vm1579 = vcmp.eq.f32.partialorder %v1578, 8.507059e+37
    %v1580 = vand.u32 %v1568, 2147483648
    %v1581 = vor.u32 1.1754944e-38, %v1580
    %v1582 = vsel %vm1579, %v1581, %v1577
    %v1583 = vmul.f32 %v1474, %v1582
    %v1584 = vadd.f32 %v1432, %v1583
    %v1585 = vmul.f32 %v1496, 0.5
    %v1586 = vadd.f32 %v1585, 5.5
    %v1587 = vlog2.pop %v1586
    %v1588 = vmul.f32 %v1587, 0.6931472
    %v1589 = vrcp.pop %v1588
    %v1590 = vmul.f32 %v1588, %v1589
    %v1591 = vsub.f32 1.0, %v1590
    %v1592 = vmul.f32 %v1589, %v1591
    %v1593 = vadd.f32 %v1589, %v1592
    %vm1594 = vweird.f32 %v1588
    %vm1595 = vweird.f32 %v1589
    %vm1596 = vmor %vm1594, %vm1595
    %v1597 = vsel %vm1596, %v1589, %v1593
    %v1598 = vand.u32 2147483647, %v1588
    %vm1599 = vcmp.eq.f32.partialorder %v1598, 8.507059e+37
    %v1600 = vand.u32 %v1588, 2147483648
    %v1601 = vor.u32 1.1754944e-38, %v1600
    %v1602 = vsel %vm1599, %v1601, %v1597
    %v1603 = vmul.f32 %v1474, %v1602
    %v1604 = vadd.f32 %v1452, %v1603
    %v1605 = vadd.f32 %v1516, 2.0
    %v1606 = vlog2.pop %v1605
    %v1607 = vmul.f32 %v1606, 0.6931472
    %v1608 = vrcp.pop %v1607
    %v1609 = vmul.f32 %v1607, %v1608
    %v1610 = vsub.f32 1.0, %v1609
    %v1611 = vmul.f32 %v1608, %v1610
    %v1612 = vadd.f32 %v1608, %v1611
    %vm1613 = vweird.f32 %v1607
    %vm1614 = vweird.f32 %v1608
    %vm1615 = vmor %vm1613, %vm1614
    %v1616 = vsel %vm1615, %v1608, %v1612
    %v1617 = vand.u32 2147483647, %v1607
    %vm1618 = vcmp.eq.f32.partialorder %v1617, 8.507059e+37
    %v1619 = vand.u32 %v1607, 2147483648
    %v1620 = vor.u32 1.1754944e-38, %v1619
    %v1621 = vsel %vm1618, %v1620, %v1616
    %v1622 = vmul.f32 %v1474, %v1621
    %v1623 = vadd.f32 %v1471, %v1622
    %v1624 = vrcp.pop %v1545
    %v1625 = vmul.f32 %v1545, %v1624
    %v1626 = vsub.f32 1.0, %v1625
    %v1627 = vmul.f32 %v1624, %v1626
    %v1628 = vadd.f32 %v1624, %v1627
    %vm1629 = vweird.f32 %v1545
    %vm1630 = vweird.f32 %v1624
    %vm1631 = vmor %vm1629, %vm1630
    %v1632 = vsel %vm1631, %v1624, %v1628
    %v1633 = vand.u32 2147483647, %v1545
    %vm1634 = vcmp.eq.f32.partialorder %v1633, 8.507059e+37
    %v1635 = vand.u32 %v1545, 2147483648
    %v1636 = vor.u32 1.1754944e-38, %v1635
    %v1637 = vsel %vm1634, %v1636, %v1632
    %v1638 = vmul.f32 1.0, %v1637
    %v1639 = vmul.f32 %v1565, %v1638
    %v1640 = vmul.f32 %v1584, %v1638
    %v1641 = vmul.f32 %v1604, %v1638
    %v1642 = vmul.f32 %v1623, %v1638
    %vm1643 = vcmp.eq.s32.totalorder %v138, 0
    %v1644 = vsel %vm143, %v161, 0.0
    %1645 = vadd.xlane.f32.xlu0 %v1644
    %v1646 = vpop.xlane.xlu0 %1645
    %v1647 = vsel %vm1643, %v1646, 0.0
    %v1648 = vadd.f32 %v1647, 0.0
    %vm1649 = vcmp.eq.s32.totalorder %v138, 1
    %v1650 = vsel %vm143, %v172, 0.0
    %1651 = vadd.xlane.f32.xlu0 %v1650
    %v1652 = vpop.xlane.xlu0 %1651
    %v1653 = vsel %vm1649, %v1652, 0.0
    %v1654 = vadd.f32 %v1648, %v1653
    %vm1655 = vcmp.eq.s32.totalorder %v138, 2
    %vm1656 = vcmask 57344
    %v1657 = vsel %vm1656, %v1639, 0.0
    %1658 = vadd.xlane.f32.xlu0 %v1657
    %v1659 = vpop.xlane.xlu0 %1658
    %v1660 = vsel %vm1655, %v1659, 0.0
    %v1661 = vadd.f32 %v1654, %v1660
    %vm1662 = vcmp.eq.s32.totalorder %v138, 3
    %v1663 = vsel %vm1656, %v1640, 0.0
    %1664 = vadd.xlane.f32.xlu0 %v1663
    %v1665 = vpop.xlane.xlu0 %1664
    %v1666 = vsel %vm1662, %v1665, 0.0
    %v1667 = vadd.f32 %v1661, %v1666
    %vm1668 = vcmp.eq.s32.totalorder %v138, 4
    %v1669 = vsel %vm1656, %v1641, 0.0
    %1670 = vadd.xlane.f32.xlu0 %v1669
    %v1671 = vpop.xlane.xlu0 %1670
    %v1672 = vsel %vm1668, %v1671, 0.0
    %v1673 = vadd.f32 %v1667, %v1672
    %vm1674 = vcmp.eq.s32.totalorder %v138, 5
    %v1675 = vsel %vm1656, %v1642, 0.0
    %1676 = vadd.xlane.f32.xlu0 %v1675
    %v1677 = vpop.xlane.xlu0 %1676
    %v1678 = vsel %vm1674, %v1677, 0.0
    %v1679 = vadd.f32 %v1673, %v1678
    %1680 = vst.msk [vmem:[#allocation13] sm:$0x1] %vm1656, %v1679
    // Predicated region
    $region34: #{tpu_custom_call.1} parent=1 // pred_check
      _
    $region35: #{tpu_custom_call.1} parent=1 // pred_check_branch
      %1682 = sbr.rel (0) target = $region37
    $region36: #{tpu_custom_call.1} parent=1 // pred_region
      %1684 = vsyncadd [#allocation7], 0
      %s1686 = sshll.u32 [#allocation13], 4
      %s1687 = int_to_ptr.vmem [resolvable:$true] %s1686
      %s1688 = sshll.u32 %s4, 4
      %s1689 = int_to_ptr.hbm [resolvable:$true] %s1688
      %1691 = dma.vmem_to_hbm [thread:$0]  %s1687, 16, %s1689, [#allocation7]
    $region37: #{tpu_custom_call.1} parent=1 // pred_fallthru
      _
    // Predicated region
    $region38: #{tpu_custom_call.1} parent=1 // pred_check
      _
    $region39: #{tpu_custom_call.1} parent=1 // pred_check_branch
      %1693 = sbr.rel (0) target = $region41
    $region40: #{tpu_custom_call.1} parent=1 // pred_region
      %1695 = dma.done [#allocation7], 16
    $region41: #{tpu_custom_call.1} parent=1 // pred_fallthru
      _
    %1696 = vsyncpa [#allocation6], 1
    %1697 = vsyncpa [#allocation9], 1
    %1698 = vsyncpa [#allocation12], 1
    %1699 = vsyncpa [#allocation7], 1

</llo_original>
